<compile_context>
chip_gen: v7x
topology: tpu7x:2x2x1
jax: 0.10.0
libtpu: 0.0.40
codegen_flags: <defaults>
</compile_context>

<pallas_src>
import jax
import jax.numpy as jnp
from jax.experimental import pallas as pl
from jax.experimental.pallas import tpu as pltpu

HID_DIM = 32
N_HEADS = 4
HEAD_DIM = HID_DIM // N_HEADS
PF_DIM = 64
SEQ = 8
BATCH = 2
EPS = 1e-5  # nn.LayerNorm default


def _layer_norm(x, gamma, beta):
    mean = jnp.mean(x, axis=-1, keepdims=True)
    var = jnp.mean((x - mean) ** 2, axis=-1, keepdims=True)
    return (x - mean) * jax.lax.rsqrt(var + EPS) * gamma + beta


def encoder_layer_kernel(x_ref, mask_ref, p_ref, out_ref):
    f32 = jnp.float32
    B, S, H, HD, NH, PF = BATCH, SEQ, HID_DIM, HEAD_DIM, N_HEADS, PF_DIM

    x = x_ref[...].astype(f32)                        # (B, S, H)
    xf = x.reshape(B * S, H)                          # row-stacked (B*S, H)
    key_mask = mask_ref[...].astype(f32).reshape(1, B, 1, S)
    # additive attention bias: 0 where valid, -1e10 where padded
    # (one where on the tiny (1,B,1,S) mask, then a broadcast add)
    attn_bias = jnp.where(key_mask > 0, f32(0.0), f32(-1e10))

    # ---- single packed parameter slab: static slices of p_ref (136, 96) ----
    w_qkv = p_ref[0:H, :]                             # (H, 3H)  q-part pre-scaled
    w_o = p_ref[H:2 * H, 0:H]                         # (H, H)
    w_1 = p_ref[H:2 * H, H:H + PF]                    # (H, PF)
    w_2 = p_ref[2 * H:2 * H + PF, 0:H]                # (PF, H)
    r = 2 * H + PF
    b_qkv = p_ref[r:r + 1, :]                         # (1, 3H)  q-part pre-scaled
    b_o = p_ref[r + 1:r + 2, 0:H]
    ln1_g = p_ref[r + 1:r + 2, H:2 * H]
    ln1_b = p_ref[r + 1:r + 2, 2 * H:3 * H]
    b_1 = p_ref[r + 2:r + 3, 0:PF]
    b_2 = p_ref[r + 3:r + 4, 0:H]
    ln2_g = p_ref[r + 3:r + 4, H:2 * H]
    ln2_b = p_ref[r + 3:r + 4, 2 * H:3 * H]

    # ---- fused QKV projection (one MXU push; 1/sqrt(d) already in q-weights) ----
    qkv = jnp.dot(xf, w_qkv, preferred_element_type=f32) + b_qkv   # (B*S, 3H)
    q = qkv[:, 0:H]
    k = qkv[:, H:2 * H]
    v = qkv[:, 2 * H:3 * H]

    def split_heads(t):                               # (B*S, H) -> (NH*B, S, HD)
        t3 = t.reshape(B, S, H)
        return jnp.concatenate(
            [t3[:, :, h * HD:(h + 1) * HD] for h in range(NH)], axis=0)

    qh, kh, vh = split_heads(q), split_heads(k), split_heads(v)

    # ---- head-batched attention (single leading batch dim = NH*B) ----
    energy = jnp.einsum('bqd,bkd->bqk', qh, kh,
                        preferred_element_type=f32)                # (NH*B, S, S)
    energy = energy.reshape(NH, B, S, S) + attn_bias               # masked_fill
    m = jnp.max(energy, axis=-1, keepdims=True)
    p = jnp.exp(energy - m)
    attn = p * pl.reciprocal(jnp.sum(p, axis=-1, keepdims=True), approx=True)
    ctx = jnp.einsum('bqk,bkd->bqd', attn.reshape(NH * B, S, S), vh,
                     preferred_element_type=f32)                   # (NH*B, S, HD)
    ctx = ctx.reshape(NH, B, S, HD)
    ctx = jnp.concatenate([ctx[h] for h in range(NH)], axis=-1)    # (B, S, H)
    ctx_flat = ctx.reshape(B * S, H)

    attn_out = jnp.dot(ctx_flat, w_o, preferred_element_type=f32) + b_o
    # dropout = identity in eval mode
    src1 = _layer_norm(xf + attn_out, ln1_g, ln1_b)

    # ---- positionwise feed-forward ----
    hdn = jnp.maximum(jnp.dot(src1, w_1, preferred_element_type=f32) + b_1, 0.0)
    ff = jnp.dot(hdn, w_2, preferred_element_type=f32) + b_2
    src2 = _layer_norm(src1 + ff, ln2_g, ln2_b)

    out_ref[...] = src2.reshape(B, S, H).astype(out_ref.dtype)


def pack_params(params):
    """Pack all 16 parameter arrays into a single (136, 96) slab.

    Layout (rows x cols):
      [0:H,   0:3H]   -> [wq*inv_scale | wk | wv]
      [H:2H,  0:H]    -> wo           [H:2H, H:H+PF] -> w1
      [2H:2H+PF, 0:H] -> w2
      row r   = 2H+PF -> [bq*inv_scale | bk | bv]
      row r+1         -> [bo | ln1_gamma | ln1_beta]
      row r+2         -> [b1 (PF cols)]
      row r+3         -> [b2 | ln2_gamma | ln2_beta]
      rows r+4..r+7   -> zero padding (8-row alignment)
    The attention scale 1/sqrt(head_dim) is folded into the Q projection here
    (one-time host-side prep), so the kernel never scales.
    """
    (wq, bq, wk, bk, wv, bv, wo, bo, g1, be1, w1, b1, w2, b2, g2, be2) = params
    H, PF = HID_DIM, PF_DIM
    inv_scale = jnp.float32(1.0 / (HEAD_DIM ** 0.5))
    rows = 2 * H + PF + 8                              # 136

    P = jnp.zeros((rows, 3 * H), jnp.float32)
    P = P.at[0:H, :].set(jnp.concatenate([wq * inv_scale, wk, wv], axis=1))
    P = P.at[H:2 * H, 0:H].set(wo)
    P = P.at[H:2 * H, H:H + PF].set(w1)
    P = P.at[2 * H:2 * H + PF, 0:H].set(w2)

    r = 2 * H + PF
    P = P.at[r, :].set(jnp.concatenate([bq * inv_scale, bk, bv], axis=1).reshape(-1))
    P = P.at[r + 1, 0:H].set(bo.reshape(-1))
    P = P.at[r + 1, H:2 * H].set(g1.reshape(-1))
    P = P.at[r + 1, 2 * H:3 * H].set(be1.reshape(-1))
    P = P.at[r + 2, 0:PF].set(b1.reshape(-1))
    P = P.at[r + 3, 0:H].set(b2.reshape(-1))
    P = P.at[r + 3, H:2 * H].set(g2.reshape(-1))
    P = P.at[r + 3, 2 * H:3 * H].set(be2.reshape(-1))
    return P


def encoder_layer(x, mask, p_slab):
    B, S, H = x.shape

    def full(shape):
        nd = len(shape)
        return pl.BlockSpec(shape, lambda i, _nd=nd: (0,) * _nd)

    return pl.pallas_call(
        encoder_layer_kernel,
        out_shape=jax.ShapeDtypeStruct((B, S, H), x.dtype),
        grid_spec=pltpu.PrefetchScalarGridSpec(
            num_scalar_prefetch=0,
            grid=(1,),  # collapsed grid: one program does all of (B, S, H)
            in_specs=[full(x.shape), full(mask.shape), full(p_slab.shape)],
            out_specs=full((B, S, H)),
        ),
        compiler_params=pltpu.CompilerParams(
            dimension_semantics=("arbitrary",)),
    )(x, mask, p_slab)


def encoder_layer_ref(x, mask, params):
    """Pure-JAX reference mirroring the PyTorch forward (eval mode)."""
    (wq, bq, wk, bk, wv, bv, wo, bo, g1, be1, w1, b1, w2, b2, g2, be2) = params
    B, S, H = x.shape
    q = x @ wq + bq
    k = x @ wk + bk
    v = x @ wv + bv
    qh = q.reshape(B, S, N_HEADS, HEAD_DIM).transpose(0, 2, 1, 3)
    kh = k.reshape(B, S, N_HEADS, HEAD_DIM).transpose(0, 2, 1, 3)
    vh = v.reshape(B, S, N_HEADS, HEAD_DIM).transpose(0, 2, 1, 3)
    energy = jnp.einsum('bhqd,bhkd->bhqk', qh, kh) / (HEAD_DIM ** 0.5)
    energy = jnp.where(mask[:, :, None, :] > 0, energy, -1e10)
    attn = jax.nn.softmax(energy, axis=-1)
    ctx = jnp.einsum('bhqk,bhkd->bhqd', attn, vh).transpose(0, 2, 1, 3).reshape(B, S, H)
    attn_out = ctx @ wo + bo
    src1 = _layer_norm(x + attn_out, g1, be1)
    ff = jnp.maximum(src1 @ w1 + b1, 0.0) @ w2 + b2
    return _layer_norm(src1 + ff, g2, be2)


if __name__ == "__main__":
    key = jax.random.PRNGKey(0)
    ks = jax.random.split(key, 16)

    def w(k, shape):
        return 0.02 * jax.random.normal(k, shape, jnp.float32)

    x = jax.random.normal(ks[0], (BATCH, SEQ, HID_DIM), jnp.float32)
    # key mask: batch 0 fully valid, batch 1 has last 3 positions padded
    lens = jnp.array([SEQ, SEQ - 3])
    mask = (jnp.arange(SEQ)[None, :] < lens[:, None]).astype(jnp.float32)[:, None, :]

    params = (
        w(ks[1], (HID_DIM, HID_DIM)), w(ks[2], (1, HID_DIM)),    # fc_q
        w(ks[3], (HID_DIM, HID_DIM)), w(ks[4], (1, HID_DIM)),    # fc_k
        w(ks[5], (HID_DIM, HID_DIM)), w(ks[6], (1, HID_DIM)),    # fc_v
        w(ks[7], (HID_DIM, HID_DIM)), w(ks[8], (1, HID_DIM)),    # fc_o
        jnp.ones((1, HID_DIM), jnp.float32), jnp.zeros((1, HID_DIM), jnp.float32),  # LN1
        w(ks[9], (HID_DIM, PF_DIM)), w(ks[10], (1, PF_DIM)),     # fc_1
        w(ks[11], (PF_DIM, HID_DIM)), w(ks[12], (1, HID_DIM)),   # fc_2
        jnp.ones((1, HID_DIM), jnp.float32), jnp.zeros((1, HID_DIM), jnp.float32),  # LN2
    )

    p_slab = pack_params(params)
    out = jax.block_until_ready(encoder_layer(x, mask, p_slab))
    ref = encoder_layer_ref(x, mask, params)
    assert out.shape == (BATCH, SEQ, HID_DIM)
    # slightly looser tolerance: in-kernel softmax uses approx (EUP) reciprocal
    assert jnp.allclose(out, ref, atol=2e-3, rtol=2e-3), "mismatch vs JAX reference"
    print("KERNEL_OK")
</pallas_src>

<mosaic_0001>
module attributes {stable_mosaic.version = 11 : i64} {
  func.func @encoder_layer_kernel(%arg0: i32, %arg1: memref<2x8x32xf32, #tpu.memory_space<vmem>>, %arg2: memref<2x1x8xf32, #tpu.memory_space<vmem>>, %arg3: memref<136x96xf32, #tpu.memory_space<vmem>>, %arg4: memref<2x8x32xf32, #tpu.memory_space<vmem>>) attributes {dimension_semantics = [#tpu.dimension_semantics<arbitrary>], iteration_bounds = array<i64: 1>, scalar_prefetch = 0 : i64, scratch_operands = 0 : i64, tpu.core_type = #tpu.core_type<tc>, window_params = [{pipeline_mode = #tpu.pipeline_mode<synchronous>, transform_indices = @transform_0, window_bounds = array<i64: 2, 8, 32>}, {pipeline_mode = #tpu.pipeline_mode<synchronous>, transform_indices = @transform_1, window_bounds = array<i64: 2, 1, 8>}, {pipeline_mode = #tpu.pipeline_mode<synchronous>, transform_indices = @transform_2, window_bounds = array<i64: 136, 96>}, {pipeline_mode = #tpu.pipeline_mode<synchronous>, transform_indices = @transform_3, window_bounds = array<i64: 2, 8, 32>}]} {
    %c0 = arith.constant 0 : index
    %c0_0 = arith.constant 0 : index
    %c0_1 = arith.constant 0 : index
    %0 = vector.load %arg1[%c0, %c0_0, %c0_1] : memref<2x8x32xf32, #tpu.memory_space<vmem>>, vector<2x8x32xf32>
    %1 = vector.shape_cast %0 : vector<2x8x32xf32> to vector<16x32xf32>
    %c0_2 = arith.constant 0 : index
    %c0_3 = arith.constant 0 : index
    %c0_4 = arith.constant 0 : index
    %2 = vector.load %arg2[%c0_2, %c0_3, %c0_4] : memref<2x1x8xf32, #tpu.memory_space<vmem>>, vector<2x1x8xf32>
    %3 = vector.shape_cast %2 : vector<2x1x8xf32> to vector<1x2x1x8xf32>
    %cst = arith.constant 0.000000e+00 : f32
    %4 = vector.broadcast %cst : f32 to vector<1x2x1x8xf32>
    %5 = arith.cmpf ogt, %3, %4 : vector<1x2x1x8xf32>
    %cst_5 = arith.constant 0.000000e+00 : f32
    %cst_6 = arith.constant -1.000000e+10 : f32
    %6 = vector.broadcast %cst_5 : f32 to vector<1x2x1x8xf32>
    %7 = vector.broadcast %cst_6 : f32 to vector<1x2x1x8xf32>
    %8 = arith.select %5, %6, %7 : vector<1x2x1x8xi1>, vector<1x2x1x8xf32>
    %c0_7 = arith.constant 0 : index
    %c0_8 = arith.constant 0 : index
    %9 = vector.load %arg3[%c0_7, %c0_8] : memref<136x96xf32, #tpu.memory_space<vmem>>, vector<32x96xf32>
    %c32 = arith.constant 32 : index
    %c0_9 = arith.constant 0 : index
    %10 = vector.load %arg3[%c32, %c0_9] : memref<136x96xf32, #tpu.memory_space<vmem>>, vector<32x32xf32>
    %c32_10 = arith.constant 32 : index
    %c32_11 = arith.constant 32 : index
    %11 = vector.load %arg3[%c32_10, %c32_11] : memref<136x96xf32, #tpu.memory_space<vmem>>, vector<32x64xf32>
    %c64 = arith.constant 64 : index
    %c0_12 = arith.constant 0 : index
    %12 = vector.load %arg3[%c64, %c0_12] : memref<136x96xf32, #tpu.memory_space<vmem>>, vector<64x32xf32>
    %c128 = arith.constant 128 : index
    %c0_13 = arith.constant 0 : index
    %13 = vector.load %arg3[%c128, %c0_13] : memref<136x96xf32, #tpu.memory_space<vmem>>, vector<1x96xf32>
    %c129 = arith.constant 129 : index
    %c0_14 = arith.constant 0 : index
    %14 = vector.load %arg3[%c129, %c0_14] : memref<136x96xf32, #tpu.memory_space<vmem>>, vector<1x32xf32>
    %c129_15 = arith.constant 129 : index
    %c32_16 = arith.constant 32 : index
    %15 = vector.load %arg3[%c129_15, %c32_16] : memref<136x96xf32, #tpu.memory_space<vmem>>, vector<1x32xf32>
    %c129_17 = arith.constant 129 : index
    %c64_18 = arith.constant 64 : index
    %16 = vector.load %arg3[%c129_17, %c64_18] : memref<136x96xf32, #tpu.memory_space<vmem>>, vector<1x32xf32>
    %c130 = arith.constant 130 : index
    %c0_19 = arith.constant 0 : index
    %17 = vector.load %arg3[%c130, %c0_19] : memref<136x96xf32, #tpu.memory_space<vmem>>, vector<1x64xf32>
    %c131 = arith.constant 131 : index
    %c0_20 = arith.constant 0 : index
    %18 = vector.load %arg3[%c131, %c0_20] : memref<136x96xf32, #tpu.memory_space<vmem>>, vector<1x32xf32>
    %c131_21 = arith.constant 131 : index
    %c32_22 = arith.constant 32 : index
    %19 = vector.load %arg3[%c131_21, %c32_22] : memref<136x96xf32, #tpu.memory_space<vmem>>, vector<1x32xf32>
    %c131_23 = arith.constant 131 : index
    %c64_24 = arith.constant 64 : index
    %20 = vector.load %arg3[%c131_23, %c64_24] : memref<136x96xf32, #tpu.memory_space<vmem>>, vector<1x32xf32>
    %cst_25 = arith.constant dense<0.000000e+00> : vector<16x96xf32>
    %21 = tpu.matmul %1, %9, %cst_25 {dimension_numbers = #tpu.dot_dimension_numbers<[1], [0], [0], [1], [0, 0, 1, 1], [], []>} : vector<16x32xf32>, vector<32x96xf32>, vector<16x96xf32> -> vector<16x96xf32>
    %22 = vector.broadcast %13 : vector<1x96xf32> to vector<16x96xf32>
    %23 = arith.addf %21, %22 : vector<16x96xf32>
    %24 = vector.extract_strided_slice %23 {offsets = [0, 0], sizes = [16, 32], strides = [1, 1]} : vector<16x96xf32> to vector<16x32xf32>
    %25 = vector.extract_strided_slice %23 {offsets = [0, 32], sizes = [16, 32], strides = [1, 1]} : vector<16x96xf32> to vector<16x32xf32>
    %26 = vector.extract_strided_slice %23 {offsets = [0, 64], sizes = [16, 32], strides = [1, 1]} : vector<16x96xf32> to vector<16x32xf32>
    %27 = vector.shape_cast %24 : vector<16x32xf32> to vector<2x8x32xf32>
    %28 = vector.extract_strided_slice %27 {offsets = [0, 0, 0], sizes = [2, 8, 8], strides = [1, 1, 1]} : vector<2x8x32xf32> to vector<2x8x8xf32>
    %29 = vector.extract_strided_slice %27 {offsets = [0, 0, 8], sizes = [2, 8, 8], strides = [1, 1, 1]} : vector<2x8x32xf32> to vector<2x8x8xf32>
    %30 = vector.extract_strided_slice %27 {offsets = [0, 0, 16], sizes = [2, 8, 8], strides = [1, 1, 1]} : vector<2x8x32xf32> to vector<2x8x8xf32>
    %31 = vector.extract_strided_slice %27 {offsets = [0, 0, 24], sizes = [2, 8, 8], strides = [1, 1, 1]} : vector<2x8x32xf32> to vector<2x8x8xf32>
    %32 = tpu.concatenate %28, %29, %30, %31 in 0 : vector<2x8x8xf32>, vector<2x8x8xf32>, vector<2x8x8xf32>, vector<2x8x8xf32> -> vector<8x8x8xf32>
    %33 = vector.shape_cast %25 : vector<16x32xf32> to vector<2x8x32xf32>
    %34 = vector.extract_strided_slice %33 {offsets = [0, 0, 0], sizes = [2, 8, 8], strides = [1, 1, 1]} : vector<2x8x32xf32> to vector<2x8x8xf32>
    %35 = vector.extract_strided_slice %33 {offsets = [0, 0, 8], sizes = [2, 8, 8], strides = [1, 1, 1]} : vector<2x8x32xf32> to vector<2x8x8xf32>
    %36 = vector.extract_strided_slice %33 {offsets = [0, 0, 16], sizes = [2, 8, 8], strides = [1, 1, 1]} : vector<2x8x32xf32> to vector<2x8x8xf32>
    %37 = vector.extract_strided_slice %33 {offsets = [0, 0, 24], sizes = [2, 8, 8], strides = [1, 1, 1]} : vector<2x8x32xf32> to vector<2x8x8xf32>
    %38 = tpu.concatenate %34, %35, %36, %37 in 0 : vector<2x8x8xf32>, vector<2x8x8xf32>, vector<2x8x8xf32>, vector<2x8x8xf32> -> vector<8x8x8xf32>
    %39 = vector.shape_cast %26 : vector<16x32xf32> to vector<2x8x32xf32>
    %40 = vector.extract_strided_slice %39 {offsets = [0, 0, 0], sizes = [2, 8, 8], strides = [1, 1, 1]} : vector<2x8x32xf32> to vector<2x8x8xf32>
    %41 = vector.extract_strided_slice %39 {offsets = [0, 0, 8], sizes = [2, 8, 8], strides = [1, 1, 1]} : vector<2x8x32xf32> to vector<2x8x8xf32>
    %42 = vector.extract_strided_slice %39 {offsets = [0, 0, 16], sizes = [2, 8, 8], strides = [1, 1, 1]} : vector<2x8x32xf32> to vector<2x8x8xf32>
    %43 = vector.extract_strided_slice %39 {offsets = [0, 0, 24], sizes = [2, 8, 8], strides = [1, 1, 1]} : vector<2x8x32xf32> to vector<2x8x8xf32>
    %44 = tpu.concatenate %40, %41, %42, %43 in 0 : vector<2x8x8xf32>, vector<2x8x8xf32>, vector<2x8x8xf32>, vector<2x8x8xf32> -> vector<8x8x8xf32>
    "tpu.trace_start"() <{level = 10 : i32, message = "bqd,bkd->bqk"}> : () -> ()
    %cst_26 = arith.constant dense<0.000000e+00> : vector<8x8x8xf32>
    %45 = tpu.matmul %32, %38, %cst_26 {dimension_numbers = #tpu.dot_dimension_numbers<[2], [2], [1], [1], [0, 0, 0, 1, 1, 1], [0], [0]>} : vector<8x8x8xf32>, vector<8x8x8xf32>, vector<8x8x8xf32> -> vector<8x8x8xf32>
    "tpu.trace_stop"() : () -> ()
    %46 = vector.shape_cast %45 : vector<8x8x8xf32> to vector<4x2x8x8xf32>
    %47 = vector.broadcast %8 : vector<1x2x1x8xf32> to vector<4x2x8x8xf32>
    %48 = arith.addf %46, %47 : vector<4x2x8x8xf32>
    %cst_27 = arith.constant dense<0xFF800000> : vector<4x2x8xf32>
    %49 = vector.multi_reduction <maximumf>, %48, %cst_27 [3] : vector<4x2x8x8xf32> to vector<4x2x8xf32>
    %50 = vector.shape_cast %49 : vector<4x2x8xf32> to vector<4x2x8x1xf32>
    %51 = vector.broadcast %50 : vector<4x2x8x1xf32> to vector<4x2x8x8xf32>
    %52 = arith.subf %48, %51 : vector<4x2x8x8xf32>
    %53 = math.exp %52 : vector<4x2x8x8xf32>
    %cst_28 = arith.constant dense<0.000000e+00> : vector<4x2x8xf32>
    %54 = vector.multi_reduction <add>, %53, %cst_28 [3] : vector<4x2x8x8xf32> to vector<4x2x8xf32>
    %55 = vector.shape_cast %54 : vector<4x2x8xf32> to vector<4x2x8x1xf32>
    %56 = tpu.reciprocal %55 {approx = true} : vector<4x2x8x1xf32> -> vector<4x2x8x1xf32>
    %57 = vector.broadcast %56 : vector<4x2x8x1xf32> to vector<4x2x8x8xf32>
    %58 = arith.mulf %53, %57 : vector<4x2x8x8xf32>
    %59 = vector.shape_cast %58 : vector<4x2x8x8xf32> to vector<8x8x8xf32>
    "tpu.trace_start"() <{level = 10 : i32, message = "bqk,bkd->bqd"}> : () -> ()
    %cst_29 = arith.constant dense<0.000000e+00> : vector<8x8x8xf32>
    %60 = tpu.matmul %59, %44, %cst_29 {dimension_numbers = #tpu.dot_dimension_numbers<[2], [1], [1], [2], [0, 0, 0, 1, 1, 2], [0], [0]>} : vector<8x8x8xf32>, vector<8x8x8xf32>, vector<8x8x8xf32> -> vector<8x8x8xf32>
    "tpu.trace_stop"() : () -> ()
    %61 = vector.shape_cast %60 : vector<8x8x8xf32> to vector<4x2x8x8xf32>
    %62 = vector.extract_strided_slice %61 {offsets = [0, 0, 0, 0], sizes = [1, 2, 8, 8], strides = [1, 1, 1, 1]} : vector<4x2x8x8xf32> to vector<1x2x8x8xf32>
    %63 = vector.shape_cast %62 : vector<1x2x8x8xf32> to vector<2x8x8xf32>
    %64 = vector.extract_strided_slice %61 {offsets = [1, 0, 0, 0], sizes = [1, 2, 8, 8], strides = [1, 1, 1, 1]} : vector<4x2x8x8xf32> to vector<1x2x8x8xf32>
    %65 = vector.shape_cast %64 : vector<1x2x8x8xf32> to vector<2x8x8xf32>
    %66 = vector.extract_strided_slice %61 {offsets = [2, 0, 0, 0], sizes = [1, 2, 8, 8], strides = [1, 1, 1, 1]} : vector<4x2x8x8xf32> to vector<1x2x8x8xf32>
    %67 = vector.shape_cast %66 : vector<1x2x8x8xf32> to vector<2x8x8xf32>
    %68 = vector.extract_strided_slice %61 {offsets = [3, 0, 0, 0], sizes = [1, 2, 8, 8], strides = [1, 1, 1, 1]} : vector<4x2x8x8xf32> to vector<1x2x8x8xf32>
    %69 = vector.shape_cast %68 : vector<1x2x8x8xf32> to vector<2x8x8xf32>
    %70 = tpu.concatenate %63, %65, %67, %69 in 2 : vector<2x8x8xf32>, vector<2x8x8xf32>, vector<2x8x8xf32>, vector<2x8x8xf32> -> vector<2x8x32xf32>
    %71 = vector.shape_cast %70 : vector<2x8x32xf32> to vector<16x32xf32>
    %cst_30 = arith.constant dense<0.000000e+00> : vector<16x32xf32>
    %72 = tpu.matmul %71, %10, %cst_30 {dimension_numbers = #tpu.dot_dimension_numbers<[1], [0], [0], [1], [0, 0, 1, 1], [], []>} : vector<16x32xf32>, vector<32x32xf32>, vector<16x32xf32> -> vector<16x32xf32>
    %73 = vector.broadcast %14 : vector<1x32xf32> to vector<16x32xf32>
    %74 = arith.addf %72, %73 : vector<16x32xf32>
    %75 = arith.addf %1, %74 : vector<16x32xf32>
    %cst_31 = arith.constant dense<0.000000e+00> : vector<16xf32>
    %76 = vector.multi_reduction <add>, %75, %cst_31 [1] : vector<16x32xf32> to vector<16xf32>
    %77 = vector.shape_cast %76 : vector<16xf32> to vector<16x1xf32>
    %cst_32 = arith.constant 3.200000e+01 : f32
    %78 = vector.broadcast %cst_32 : f32 to vector<16x1xf32>
    %79 = arith.divf %77, %78 : vector<16x1xf32>
    %80 = vector.broadcast %79 : vector<16x1xf32> to vector<16x32xf32>
    %81 = arith.subf %75, %80 : vector<16x32xf32>
    %82 = arith.mulf %81, %81 : vector<16x32xf32>
    %cst_33 = arith.constant dense<0.000000e+00> : vector<16xf32>
    %83 = vector.multi_reduction <add>, %82, %cst_33 [1] : vector<16x32xf32> to vector<16xf32>
    %84 = vector.shape_cast %83 : vector<16xf32> to vector<16x1xf32>
    %cst_34 = arith.constant 3.200000e+01 : f32
    %85 = vector.broadcast %cst_34 : f32 to vector<16x1xf32>
    %86 = arith.divf %84, %85 : vector<16x1xf32>
    %87 = vector.broadcast %79 : vector<16x1xf32> to vector<16x32xf32>
    %88 = arith.subf %75, %87 : vector<16x32xf32>
    %cst_35 = arith.constant 9.99999974E-6 : f32
    %89 = vector.broadcast %cst_35 : f32 to vector<16x1xf32>
    %90 = arith.addf %86, %89 : vector<16x1xf32>
    %91 = math.rsqrt %90 : vector<16x1xf32>
    %92 = vector.broadcast %91 : vector<16x1xf32> to vector<16x32xf32>
    %93 = arith.mulf %88, %92 : vector<16x32xf32>
    %94 = vector.broadcast %15 : vector<1x32xf32> to vector<16x32xf32>
    %95 = arith.mulf %93, %94 : vector<16x32xf32>
    %96 = vector.broadcast %16 : vector<1x32xf32> to vector<16x32xf32>
    %97 = arith.addf %95, %96 : vector<16x32xf32>
    %cst_36 = arith.constant dense<0.000000e+00> : vector<16x64xf32>
    %98 = tpu.matmul %97, %11, %cst_36 {dimension_numbers = #tpu.dot_dimension_numbers<[1], [0], [0], [1], [0, 0, 1, 1], [], []>} : vector<16x32xf32>, vector<32x64xf32>, vector<16x64xf32> -> vector<16x64xf32>
    %99 = vector.broadcast %17 : vector<1x64xf32> to vector<16x64xf32>
    %100 = arith.addf %98, %99 : vector<16x64xf32>
    %cst_37 = arith.constant 0.000000e+00 : f32
    %101 = vector.broadcast %cst_37 : f32 to vector<16x64xf32>
    %102 = arith.maximumf %100, %101 : vector<16x64xf32>
    %cst_38 = arith.constant dense<0.000000e+00> : vector<16x32xf32>
    %103 = tpu.matmul %102, %12, %cst_38 {dimension_numbers = #tpu.dot_dimension_numbers<[1], [0], [0], [1], [0, 0, 1, 1], [], []>} : vector<16x64xf32>, vector<64x32xf32>, vector<16x32xf32> -> vector<16x32xf32>
    %104 = vector.broadcast %18 : vector<1x32xf32> to vector<16x32xf32>
    %105 = arith.addf %103, %104 : vector<16x32xf32>
    %106 = arith.addf %97, %105 : vector<16x32xf32>
    %cst_39 = arith.constant dense<0.000000e+00> : vector<16xf32>
    %107 = vector.multi_reduction <add>, %106, %cst_39 [1] : vector<16x32xf32> to vector<16xf32>
    %108 = vector.shape_cast %107 : vector<16xf32> to vector<16x1xf32>
    %cst_40 = arith.constant 3.200000e+01 : f32
    %109 = vector.broadcast %cst_40 : f32 to vector<16x1xf32>
    %110 = arith.divf %108, %109 : vector<16x1xf32>
    %111 = vector.broadcast %110 : vector<16x1xf32> to vector<16x32xf32>
    %112 = arith.subf %106, %111 : vector<16x32xf32>
    %113 = arith.mulf %112, %112 : vector<16x32xf32>
    %cst_41 = arith.constant dense<0.000000e+00> : vector<16xf32>
    %114 = vector.multi_reduction <add>, %113, %cst_41 [1] : vector<16x32xf32> to vector<16xf32>
    %115 = vector.shape_cast %114 : vector<16xf32> to vector<16x1xf32>
    %cst_42 = arith.constant 3.200000e+01 : f32
    %116 = vector.broadcast %cst_42 : f32 to vector<16x1xf32>
    %117 = arith.divf %115, %116 : vector<16x1xf32>
    %118 = vector.broadcast %110 : vector<16x1xf32> to vector<16x32xf32>
    %119 = arith.subf %106, %118 : vector<16x32xf32>
    %cst_43 = arith.constant 9.99999974E-6 : f32
    %120 = vector.broadcast %cst_43 : f32 to vector<16x1xf32>
    %121 = arith.addf %117, %120 : vector<16x1xf32>
    %122 = math.rsqrt %121 : vector<16x1xf32>
    %123 = vector.broadcast %122 : vector<16x1xf32> to vector<16x32xf32>
    %124 = arith.mulf %119, %123 : vector<16x32xf32>
    %125 = vector.broadcast %19 : vector<1x32xf32> to vector<16x32xf32>
    %126 = arith.mulf %124, %125 : vector<16x32xf32>
    %127 = vector.broadcast %20 : vector<1x32xf32> to vector<16x32xf32>
    %128 = arith.addf %126, %127 : vector<16x32xf32>
    %129 = vector.shape_cast %128 : vector<16x32xf32> to vector<2x8x32xf32>
    %c0_44 = arith.constant 0 : index
    %c0_45 = arith.constant 0 : index
    %c0_46 = arith.constant 0 : index
    %130 = vector.load %arg4[%c0_44, %c0_45, %c0_46] : memref<2x8x32xf32, #tpu.memory_space<vmem>>, vector<2x8x32xf32>
    tpu.vector_store %arg4[%c0_44, %c0_45, %c0_46], %129 {strides = array<i32>} : memref<2x8x32xf32, #tpu.memory_space<vmem>>, vector<2x8x32xf32>,
    return
  }
  func.func @transform_0(%arg0: i32) -> (i32, i32, i32) {
    %c0_i32 = arith.constant 0 : i32
    %c0_i32_0 = arith.constant 0 : i32
    %c0_i32_1 = arith.constant 0 : i32
    %c0_i32_2 = arith.constant 0 : i32
    return %c0_i32, %c0_i32_0, %c0_i32_1 : i32, i32, i32
  }
  func.func @transform_1(%arg0: i32) -> (i32, i32, i32) {
    %c0_i32 = arith.constant 0 : i32
    %c0_i32_0 = arith.constant 0 : i32
    %c0_i32_1 = arith.constant 0 : i32
    %c0_i32_2 = arith.constant 0 : i32
    return %c0_i32, %c0_i32_0, %c0_i32_1 : i32, i32, i32
  }
  func.func @transform_2(%arg0: i32) -> (i32, i32) {
    %c0_i32 = arith.constant 0 : i32
    %c0_i32_0 = arith.constant 0 : i32
    %c0_i32_1 = arith.constant 0 : i32
    return %c0_i32, %c0_i32_0 : i32, i32
  }
  func.func @transform_3(%arg0: i32) -> (i32, i32, i32) {
    %c0_i32 = arith.constant 0 : i32
    %c0_i32_0 = arith.constant 0 : i32
    %c0_i32_1 = arith.constant 0 : i32
    %c0_i32_2 = arith.constant 0 : i32
    return %c0_i32, %c0_i32_0, %c0_i32_1 : i32, i32, i32
  }
}

</mosaic_0001>

<llo_original>
// kernel: tpu_custom_call.1
$region0: #{tpu_custom_call.1}
  #allocation0 [shape = 'u32[]', space=smem, size = 0x4, offset = 0x4, fixed_abs, tag = 'smem constant byte address 0x4 - core index']
  #allocation1 [shape = 'u32[144,128]{1,0:T(1,128)}', space=vmem, size = 0x12000, scoped, tag = 'internal scratch']
  %s0 = inlined_call_operand.hbm [shape: f32[2,8,32], index: 0, kind: input, shape index: {}]
  %s1 = inlined_call_operand.vmem [shape: f32[2,1,8], index: 1, kind: input, shape index: {}]
  %s2 = inlined_call_operand.hbm [shape: f32[136,96], index: 2, kind: input, shape index: {}]
  %s3 = inlined_call_operand.hbm [shape: f32[2,8,32], index: 3, kind: output, shape index: {}]
  %s4 = sld [smem:[#allocation0]]
  $region30: #{tpu_custom_call.1} parent=0
    _
  %s6 = ssub.s32 1, %s4
  %s7 = scalar_select 0, %s6, %s4
  $region1: #{tpu_custom_call.1} parent=0
    #allocation2 [shape = 'u8[8192]{0}', space=vmem, size = 0x2000, scoped, tag = 'input window, operand 0, single buffered']
    #allocation3 [shape = 's32[1]{0}', space=sflag, size = 0x4, scoped, tag = 'scoped memory for tpu_custom_call.1']
    #allocation4 [shape = 's32[1]{0}', space=sflag, size = 0x4, scoped, tag = 'scoped memory for tpu_custom_call.1']
    #allocation5 [shape = 'u8[69632]{0}', space=vmem, size = 0x11000, scoped, tag = 'input window, operand 2, single buffered']
    #allocation6 [shape = 's32[1]{0}', space=sflag, size = 0x4, scoped, tag = 'scoped memory for tpu_custom_call.1']
    #allocation7 [shape = 'u8[8192]{0}', space=vmem, size = 0x2000, scoped, tag = 'output window, operand 0, single buffered']
    %8 = vsyncpa [#allocation3], 0
    %9 = vsyncpa [#allocation6], 0
    %10 = vsyncpa [#allocation4], 0
    // Predicated region
    $region2: #{tpu_custom_call.1} parent=1 // pred_check
      _
    $region3: #{tpu_custom_call.1} parent=1 // pred_check_branch
      %12 = sbr.rel (0) target = $region5
    $region4: #{tpu_custom_call.1} parent=1 // pred_region
      %s14 = ssub.s32 256, 256
      %15 = vsyncadd [#allocation3], %s14
      %s16 = sshll.u32 [#allocation2], 4
      %s17 = int_to_ptr.vmem [resolvable:$true] %s16
      %22 = dma.hbm_to_vmem [thread:$0]  %s0, 256, %s17, [#allocation3], 128, 128, 8
    $region5: #{tpu_custom_call.1} parent=1 // pred_fallthru
      _
    // Predicated region
    $region6: #{tpu_custom_call.1} parent=1 // pred_check
      _
    $region7: #{tpu_custom_call.1} parent=1 // pred_check_branch
      %24 = sbr.rel (0) target = $region9
    $region8: #{tpu_custom_call.1} parent=1 // pred_region
      _
    $region9: #{tpu_custom_call.1} parent=1 // pred_fallthru
      _
    // Predicated region
    $region10: #{tpu_custom_call.1} parent=1 // pred_check
      _
    $region11: #{tpu_custom_call.1} parent=1 // pred_check_branch
      %26 = sbr.rel (0) target = $region13
    $region12: #{tpu_custom_call.1} parent=1 // pred_region
      %s28 = ssub.s32 2176, 2176
      %29 = vsyncadd [#allocation6], %s28
      %s30 = sshll.u32 [#allocation5], 4
      %s31 = int_to_ptr.vmem [resolvable:$true] %s30
      %36 = dma.hbm_to_vmem [thread:$0]  %s2, 2176, %s31, [#allocation6], 128, 128, 8
    $region13: #{tpu_custom_call.1} parent=1 // pred_fallthru
      _
    // Predicated region
    $region14: #{tpu_custom_call.1} parent=1 // pred_check
      _
    $region15: #{tpu_custom_call.1} parent=1 // pred_check_branch
      %38 = sbr.rel (0) target = $region17
    $region16: #{tpu_custom_call.1} parent=1 // pred_region
      %39 = dma.done [#allocation3], 256
    $region17: #{tpu_custom_call.1} parent=1 // pred_fallthru
      _
    // Predicated region
    $region18: #{tpu_custom_call.1} parent=1 // pred_check
      _
    $region19: #{tpu_custom_call.1} parent=1 // pred_check_branch
      %41 = sbr.rel (0) target = $region21
    $region20: #{tpu_custom_call.1} parent=1 // pred_region
      %42 = dma.done [#allocation6], 2176
    $region21: #{tpu_custom_call.1} parent=1 // pred_fallthru
      _
    %v43 = vld [vmem:[#allocation2] sm:$0xff]
    %v44 = vld [vmem:[#allocation2 + $0x8] sm:$0xff]
    %v45 = vld [vmem:[%s1] sm:$0x1]
    %v46 = vld [vmem:[%s1 + $0x1] sm:$0x1]
    %vm47 = vcmp.gt.f32.partialorder %v45, 0.0
    %vm48 = vcmp.gt.f32.partialorder %v46, 0.0
    %v49 = vsel %vm47, 0.0, -1e+10
    %v50 = vsel %vm48, 0.0, -1e+10
    %v51 = vld [vmem:[#allocation5] sm:$0xff]
    %v52 = vld [vmem:[#allocation5 + $0x8] sm:$0xff]
    %v53 = vld [vmem:[#allocation5 + $0x10] sm:$0xff]
    %v54 = vld [vmem:[#allocation5 + $0x18] sm:$0xff]
    %v55 = vld [vmem:[#allocation5 + $0x20] sm:$0xff]
    %v56 = vld [vmem:[#allocation5 + $0x28] sm:$0xff]
    %v57 = vld [vmem:[#allocation5 + $0x30] sm:$0xff]
    %v58 = vld [vmem:[#allocation5 + $0x38] sm:$0xff]
    %v59 = vld [vmem:[#allocation5 + $0x40] sm:$0xff]
    %v60 = vld [vmem:[#allocation5 + $0x48] sm:$0xff]
    %v61 = vld [vmem:[#allocation5 + $0x50] sm:$0xff]
    %v62 = vld [vmem:[#allocation5 + $0x58] sm:$0xff]
    %v63 = vld [vmem:[#allocation5 + $0x60] sm:$0xff]
    %v64 = vld [vmem:[#allocation5 + $0x68] sm:$0xff]
    %v65 = vld [vmem:[#allocation5 + $0x70] sm:$0xff]
    %v66 = vld [vmem:[#allocation5 + $0x78] sm:$0xff]
    %v67 = vld [vmem:[#allocation5 + $0x80] sm:$0x1]
    %v68 = vld [vmem:[#allocation5 + $0x81] sm:$0x1]
    %v69 = vld [vmem:[#allocation5 + $0x82] sm:$0x1]
    %v70 = vld [vmem:[#allocation5 + $0x83] sm:$0x1]
    %v71 = vlaneseq
    %v72 = vshrl.u32 %v71, 7
    %v73 = vsub.s32 0, %v72
    %v74 = vrot.slane %v67, %v73
    %vm75 = vcmask 261120
    %v77 = vsel %vm75, %v43, 0
    %v80 = vsel %vm75, %v44, 0
    %82 = vmatprep.subr.mxu0 0.0
    %83 = vmatpush1.msra.mxu0 %v51
    %84 = vmatprep.subr.mxu0 0.0
    %85 = vmatpush1.msra.mxu0 %v52
    %86 = vmatprep.subr.mxu0 0.0
    %87 = vmatpush1.msra.mxu0 %v53
    %88 = vmatprep.subr.mxu0 0.0
    %89 = vmatpush1.msra.mxu0 %v54
    %90 = vmatprep.subr.mxu0 0.0
    %91 = vmatpush1.msra.mxu0 0.0
    %92 = vmatprep.subr.mxu0 0.0
    %93 = vmatpush1.msra.mxu0 0.0
    %94 = vmatprep.subr.mxu0 0.0
    %95 = vmatpush1.msra.mxu0 0.0
    %96 = vmatprep.subr.mxu0 0.0
    %97 = vmatpush1.msra.mxu0 0.0
    %98 = vmatprep.subr.mxu0 0.0
    %99 = vmatpush1.msra.mxu0 0.0
    %100 = vmatprep.subr.mxu0 0.0
    %101 = vmatpush1.msra.mxu0 0.0
    %102 = vmatprep.subr.mxu0 0.0
    %103 = vmatpush1.msra.mxu0 0.0
    %104 = vmatprep.subr.mxu0 0.0
    %105 = vmatpush1.msra.mxu0 0.0
    %106 = vmatprep.subr.mxu0 0.0
    %107 = vmatpush1.msra.mxu0 0.0
    %108 = vmatprep.subr.mxu0 0.0
    %109 = vmatpush1.msra.mxu0 0.0
    %110 = vmatprep.subr.mxu0 0.0
    %111 = vmatpush1.msra.mxu0 0.0
    %112 = vmatprep.subr.mxu0 0.0
    %113 = vmatpush1.msra.mxu0 0.0
    %114 = vmatprep.subr.mxu0 0.0
    %115 = vmatpush1.msra.mxu0 0.0
    %116 = vmatprep.subr.mxu0 0.0
    %117 = vmatpush1.msra.mxu0 0.0
    %118 = vmatprep.subr.mxu0 0.0
    %119 = vmatpush1.msra.mxu0 0.0
    %120 = vmatprep.subr.mxu0 0.0
    %121 = vmatpush1.msra.mxu0 0.0
    %122 = vmatprep.subr.mxu0 0.0
    %123 = vmatpush1.msra.mxu0 0.0
    %124 = vmatprep.subr.mxu0 0.0
    %125 = vmatpush1.msra.mxu0 0.0
    %126 = vmatprep.subr.mxu0 0.0
    %127 = vmatpush1.msra.mxu0 0.0
    %128 = vmatprep.subr.mxu0 0.0
    %129 = vmatpush1.msra.mxu0 0.0
    %130 = vmatprep.subr.mxu0 0.0
    %131 = vmatpush1.msra.mxu0 0.0
    %132 = vmatprep.subr.mxu0 0.0
    %133 = vmatpush1.msra.mxu0 0.0
    %134 = vmatprep.subr.mxu0 0.0
    %135 = vmatpush1.msra.mxu0 0.0
    %136 = vmatprep.subr.mxu0 0.0
    %137 = vmatpush1.msra.mxu0 0.0
    %138 = vmatprep.subr.mxu0 0.0
    %139 = vmatpush1.msra.mxu0 0.0
    %140 = vmatprep.subr.mxu0 0.0
    %141 = vmatpush1.msra.mxu0 0.0
    %142 = vmatprep.subr.mxu0 0.0
    %143 = vmatpush1.msra.mxu0 0.0
    %144 = vmatprep.subr.mxu0 0.0
    %145 = vmatpush1.msra.mxu0 0.0
    %146 = vmatprep.mubr.f32.mxu0 0.0
    %147 = vmatmul.mubr.f32.gmra.mrb[0].mxu0 %v77
    %v148 = vpop.f32.mrb[0].mxu0
    %v149 = vadd.f32 %v74, %v148
    %v150 = vpop.f32.mrb[0].mxu0
    %151 = vmatprep.mubr.f32.mxu0 0.0
    %152 = vmatmul.mubr.f32.gmra.mrb[0].mxu0 %v80
    %v153 = vpop.f32.mrb[0].mxu0
    %v154 = vadd.f32 %v74, %v153
    %v155 = vpop.f32.mrb[0].mxu0
    %156 = vdwg.mxu0
    %159 = vrot.lane.b32.xlu0 %v149, 120
    %v160 = vpop.permute.xlu0 %159
    %161 = vrot.lane.b32.xlu0 %v154, 120
    %v162 = vpop.permute.xlu0 %161
    %163 = vrot.lane.b32.xlu0 %v149, 112
    %v164 = vpop.permute.xlu0 %163
    %165 = vrot.lane.b32.xlu0 %v154, 112
    %v166 = vpop.permute.xlu0 %165
    %167 = vrot.lane.b32.xlu0 %v149, 104
    %v168 = vpop.permute.xlu0 %167
    %169 = vrot.lane.b32.xlu0 %v154, 104
    %v170 = vpop.permute.xlu0 %169
    %171 = vrot.lane.b32.xlu0 %v149, 96
    %v172 = vpop.permute.xlu0 %171
    %vm173 = vcmask 64512
    %v174 = vsel %vm173, %v149, 0
    %v176 = vsel %vm173, %v172, 0
    %178 = vmatprep.subr.mxu0 0.0
    %179 = vmatpush1.xpose.msra.mxu0 %v176
    %180 = vmatprep.subr.mxu0 0.0
    %181 = vmatpush1.xpose.msra.mxu0 0.0
    %182 = vmatprep.subr.mxu0 0.0
    %183 = vmatpush1.xpose.msra.mxu0 0.0
    %184 = vmatprep.subr.mxu0 0.0
    %185 = vmatpush1.xpose.msra.mxu0 0.0
    %186 = vmatprep.subr.mxu0 0.0
    %187 = vmatpush1.xpose.msra.mxu0 0.0
    %188 = vmatprep.subr.mxu0 0.0
    %189 = vmatpush1.xpose.msra.mxu0 0.0
    %190 = vmatprep.subr.mxu0 0.0
    %191 = vmatpush1.xpose.msra.mxu0 0.0
    %192 = vmatprep.subr.mxu0 0.0
    %193 = vmatpush1.xpose.msra.mxu0 0.0
    %194 = vmatprep.subr.mxu0 0.0
    %195 = vmatpush1.xpose.msra.mxu0 0.0
    %196 = vmatprep.subr.mxu0 0.0
    %197 = vmatpush1.xpose.msra.mxu0 0.0
    %198 = vmatprep.subr.mxu0 0.0
    %199 = vmatpush1.xpose.msra.mxu0 0.0
    %200 = vmatprep.subr.mxu0 0.0
    %201 = vmatpush1.xpose.msra.mxu0 0.0
    %202 = vmatprep.subr.mxu0 0.0
    %203 = vmatpush1.xpose.msra.mxu0 0.0
    %204 = vmatprep.subr.mxu0 0.0
    %205 = vmatpush1.xpose.msra.mxu0 0.0
    %206 = vmatprep.subr.mxu0 0.0
    %207 = vmatpush1.xpose.msra.mxu0 0.0
    %208 = vmatprep.subr.mxu0 0.0
    %209 = vmatpush1.xpose.msra.mxu0 0.0
    %210 = vmatprep.subr.mxu0 0.0
    %211 = vmatpush1.xpose.msra.mxu0 0.0
    %212 = vmatprep.subr.mxu0 0.0
    %213 = vmatpush1.xpose.msra.mxu0 0.0
    %214 = vmatprep.subr.mxu0 0.0
    %215 = vmatpush1.xpose.msra.mxu0 0.0
    %216 = vmatprep.subr.mxu0 0.0
    %217 = vmatpush1.xpose.msra.mxu0 0.0
    %218 = vmatprep.subr.mxu0 0.0
    %219 = vmatpush1.xpose.msra.mxu0 0.0
    %220 = vmatprep.subr.mxu0 0.0
    %221 = vmatpush1.xpose.msra.mxu0 0.0
    %222 = vmatprep.subr.mxu0 0.0
    %223 = vmatpush1.xpose.msra.mxu0 0.0
    %224 = vmatprep.subr.mxu0 0.0
    %225 = vmatpush1.xpose.msra.mxu0 0.0
    %226 = vmatprep.subr.mxu0 0.0
    %227 = vmatpush1.xpose.msra.mxu0 0.0
    %228 = vmatprep.subr.mxu0 0.0
    %229 = vmatpush1.xpose.msra.mxu0 0.0
    %230 = vmatprep.subr.mxu0 0.0
    %231 = vmatpush1.xpose.msra.mxu0 0.0
    %232 = vmatprep.subr.mxu0 0.0
    %233 = vmatpush1.xpose.msra.mxu0 0.0
    %234 = vmatprep.subr.mxu0 0.0
    %235 = vmatpush1.xpose.msra.mxu0 0.0
    %236 = vmatprep.subr.mxu0 0.0
    %237 = vmatpush1.xpose.msra.mxu0 0.0
    %238 = vmatprep.subr.mxu0 0.0
    %239 = vmatpush1.xpose.msra.mxu0 0.0
    %240 = vmatprep.subr.mxu0 0.0
    %241 = vmatpush1.xpose.msra.mxu0 0.0
    %242 = vmatprep.mubr.f32.mxu0 0.0
    %243 = vmatmul.mubr.f32.gmra.mrb[0].mxu0 %v174
    %v244 = vpop.f32.mrb[0].mxu0
    %v245 = vadd.f32 0.0, %v244
    %v246 = vpop.f32.mrb[0].mxu0
    %247 = vdwg.mxu0
    %248 = vrot.lane.b32.xlu0 %v154, 96
    %v249 = vpop.permute.xlu0 %248
    %v250 = vsel %vm173, %v154, 0
    %v252 = vsel %vm173, %v249, 0
    %254 = vmatprep.subr.mxu0 0.0
    %255 = vmatpush1.xpose.msra.mxu0 %v252
    %256 = vmatprep.subr.mxu0 0.0
    %257 = vmatpush1.xpose.msra.mxu0 0.0
    %258 = vmatprep.subr.mxu0 0.0
    %259 = vmatpush1.xpose.msra.mxu0 0.0
    %260 = vmatprep.subr.mxu0 0.0
    %261 = vmatpush1.xpose.msra.mxu0 0.0
    %262 = vmatprep.subr.mxu0 0.0
    %263 = vmatpush1.xpose.msra.mxu0 0.0
    %264 = vmatprep.subr.mxu0 0.0
    %265 = vmatpush1.xpose.msra.mxu0 0.0
    %266 = vmatprep.subr.mxu0 0.0
    %267 = vmatpush1.xpose.msra.mxu0 0.0
    %268 = vmatprep.subr.mxu0 0.0
    %269 = vmatpush1.xpose.msra.mxu0 0.0
    %270 = vmatprep.subr.mxu0 0.0
    %271 = vmatpush1.xpose.msra.mxu0 0.0
    %272 = vmatprep.subr.mxu0 0.0
    %273 = vmatpush1.xpose.msra.mxu0 0.0
    %274 = vmatprep.subr.mxu0 0.0
    %275 = vmatpush1.xpose.msra.mxu0 0.0
    %276 = vmatprep.subr.mxu0 0.0
    %277 = vmatpush1.xpose.msra.mxu0 0.0
    %278 = vmatprep.subr.mxu0 0.0
    %279 = vmatpush1.xpose.msra.mxu0 0.0
    %280 = vmatprep.subr.mxu0 0.0
    %281 = vmatpush1.xpose.msra.mxu0 0.0
    %282 = vmatprep.subr.mxu0 0.0
    %283 = vmatpush1.xpose.msra.mxu0 0.0
    %284 = vmatprep.subr.mxu0 0.0
    %285 = vmatpush1.xpose.msra.mxu0 0.0
    %286 = vmatprep.subr.mxu0 0.0
    %287 = vmatpush1.xpose.msra.mxu0 0.0
    %288 = vmatprep.subr.mxu0 0.0
    %289 = vmatpush1.xpose.msra.mxu0 0.0
    %290 = vmatprep.subr.mxu0 0.0
    %291 = vmatpush1.xpose.msra.mxu0 0.0
    %292 = vmatprep.subr.mxu0 0.0
    %293 = vmatpush1.xpose.msra.mxu0 0.0
    %294 = vmatprep.subr.mxu0 0.0
    %295 = vmatpush1.xpose.msra.mxu0 0.0
    %296 = vmatprep.subr.mxu0 0.0
    %297 = vmatpush1.xpose.msra.mxu0 0.0
    %298 = vmatprep.subr.mxu0 0.0
    %299 = vmatpush1.xpose.msra.mxu0 0.0
    %300 = vmatprep.subr.mxu0 0.0
    %301 = vmatpush1.xpose.msra.mxu0 0.0
    %302 = vmatprep.subr.mxu0 0.0
    %303 = vmatpush1.xpose.msra.mxu0 0.0
    %304 = vmatprep.subr.mxu0 0.0
    %305 = vmatpush1.xpose.msra.mxu0 0.0
    %306 = vmatprep.subr.mxu0 0.0
    %307 = vmatpush1.xpose.msra.mxu0 0.0
    %308 = vmatprep.subr.mxu0 0.0
    %309 = vmatpush1.xpose.msra.mxu0 0.0
    %310 = vmatprep.subr.mxu0 0.0
    %311 = vmatpush1.xpose.msra.mxu0 0.0
    %312 = vmatprep.subr.mxu0 0.0
    %313 = vmatpush1.xpose.msra.mxu0 0.0
    %314 = vmatprep.subr.mxu0 0.0
    %315 = vmatpush1.xpose.msra.mxu0 0.0
    %316 = vmatprep.subr.mxu0 0.0
    %317 = vmatpush1.xpose.msra.mxu0 0.0
    %318 = vmatprep.mubr.f32.mxu0 0.0
    %319 = vmatmul.mubr.f32.gmra.mrb[0].mxu0 %v250
    %v320 = vpop.f32.mrb[0].mxu0
    %v321 = vadd.f32 0.0, %v320
    %v322 = vpop.f32.mrb[0].mxu0
    %323 = vdwg.mxu0
    %324 = vrot.lane.b32.xlu0 %v160, 96
    %v325 = vpop.permute.xlu0 %324
    %v326 = vsel %vm173, %v160, 0
    %v328 = vsel %vm173, %v325, 0
    %330 = vmatprep.subr.mxu0 0.0
    %331 = vmatpush1.xpose.msra.mxu0 %v328
    %332 = vmatprep.subr.mxu0 0.0
    %333 = vmatpush1.xpose.msra.mxu0 0.0
    %334 = vmatprep.subr.mxu0 0.0
    %335 = vmatpush1.xpose.msra.mxu0 0.0
    %336 = vmatprep.subr.mxu0 0.0
    %337 = vmatpush1.xpose.msra.mxu0 0.0
    %338 = vmatprep.subr.mxu0 0.0
    %339 = vmatpush1.xpose.msra.mxu0 0.0
    %340 = vmatprep.subr.mxu0 0.0
    %341 = vmatpush1.xpose.msra.mxu0 0.0
    %342 = vmatprep.subr.mxu0 0.0
    %343 = vmatpush1.xpose.msra.mxu0 0.0
    %344 = vmatprep.subr.mxu0 0.0
    %345 = vmatpush1.xpose.msra.mxu0 0.0
    %346 = vmatprep.subr.mxu0 0.0
    %347 = vmatpush1.xpose.msra.mxu0 0.0
    %348 = vmatprep.subr.mxu0 0.0
    %349 = vmatpush1.xpose.msra.mxu0 0.0
    %350 = vmatprep.subr.mxu0 0.0
    %351 = vmatpush1.xpose.msra.mxu0 0.0
    %352 = vmatprep.subr.mxu0 0.0
    %353 = vmatpush1.xpose.msra.mxu0 0.0
    %354 = vmatprep.subr.mxu0 0.0
    %355 = vmatpush1.xpose.msra.mxu0 0.0
    %356 = vmatprep.subr.mxu0 0.0
    %357 = vmatpush1.xpose.msra.mxu0 0.0
    %358 = vmatprep.subr.mxu0 0.0
    %359 = vmatpush1.xpose.msra.mxu0 0.0
    %360 = vmatprep.subr.mxu0 0.0
    %361 = vmatpush1.xpose.msra.mxu0 0.0
    %362 = vmatprep.subr.mxu0 0.0
    %363 = vmatpush1.xpose.msra.mxu0 0.0
    %364 = vmatprep.subr.mxu0 0.0
    %365 = vmatpush1.xpose.msra.mxu0 0.0
    %366 = vmatprep.subr.mxu0 0.0
    %367 = vmatpush1.xpose.msra.mxu0 0.0
    %368 = vmatprep.subr.mxu0 0.0
    %369 = vmatpush1.xpose.msra.mxu0 0.0
    %370 = vmatprep.subr.mxu0 0.0
    %371 = vmatpush1.xpose.msra.mxu0 0.0
    %372 = vmatprep.subr.mxu0 0.0
    %373 = vmatpush1.xpose.msra.mxu0 0.0
    %374 = vmatprep.subr.mxu0 0.0
    %375 = vmatpush1.xpose.msra.mxu0 0.0
    %376 = vmatprep.subr.mxu0 0.0
    %377 = vmatpush1.xpose.msra.mxu0 0.0
    %378 = vmatprep.subr.mxu0 0.0
    %379 = vmatpush1.xpose.msra.mxu0 0.0
    %380 = vmatprep.subr.mxu0 0.0
    %381 = vmatpush1.xpose.msra.mxu0 0.0
    %382 = vmatprep.subr.mxu0 0.0
    %383 = vmatpush1.xpose.msra.mxu0 0.0
    %384 = vmatprep.subr.mxu0 0.0
    %385 = vmatpush1.xpose.msra.mxu0 0.0
    %386 = vmatprep.subr.mxu0 0.0
    %387 = vmatpush1.xpose.msra.mxu0 0.0
    %388 = vmatprep.subr.mxu0 0.0
    %389 = vmatpush1.xpose.msra.mxu0 0.0
    %390 = vmatprep.subr.mxu0 0.0
    %391 = vmatpush1.xpose.msra.mxu0 0.0
    %392 = vmatprep.subr.mxu0 0.0
    %393 = vmatpush1.xpose.msra.mxu0 0.0
    %394 = vmatprep.mubr.f32.mxu0 0.0
    %395 = vmatmul.mubr.f32.gmra.mrb[0].mxu0 %v326
    %v396 = vpop.f32.mrb[0].mxu0
    %v397 = vadd.f32 0.0, %v396
    %v398 = vpop.f32.mrb[0].mxu0
    %399 = vdwg.mxu0
    %400 = vrot.lane.b32.xlu0 %v162, 96
    %v401 = vpop.permute.xlu0 %400
    %v402 = vsel %vm173, %v162, 0
    %v404 = vsel %vm173, %v401, 0
    %406 = vmatprep.subr.mxu0 0.0
    %407 = vmatpush1.xpose.msra.mxu0 %v404
    %408 = vmatprep.subr.mxu0 0.0
    %409 = vmatpush1.xpose.msra.mxu0 0.0
    %410 = vmatprep.subr.mxu0 0.0
    %411 = vmatpush1.xpose.msra.mxu0 0.0
    %412 = vmatprep.subr.mxu0 0.0
    %413 = vmatpush1.xpose.msra.mxu0 0.0
    %414 = vmatprep.subr.mxu0 0.0
    %415 = vmatpush1.xpose.msra.mxu0 0.0
    %416 = vmatprep.subr.mxu0 0.0
    %417 = vmatpush1.xpose.msra.mxu0 0.0
    %418 = vmatprep.subr.mxu0 0.0
    %419 = vmatpush1.xpose.msra.mxu0 0.0
    %420 = vmatprep.subr.mxu0 0.0
    %421 = vmatpush1.xpose.msra.mxu0 0.0
    %422 = vmatprep.subr.mxu0 0.0
    %423 = vmatpush1.xpose.msra.mxu0 0.0
    %424 = vmatprep.subr.mxu0 0.0
    %425 = vmatpush1.xpose.msra.mxu0 0.0
    %426 = vmatprep.subr.mxu0 0.0
    %427 = vmatpush1.xpose.msra.mxu0 0.0
    %428 = vmatprep.subr.mxu0 0.0
    %429 = vmatpush1.xpose.msra.mxu0 0.0
    %430 = vmatprep.subr.mxu0 0.0
    %431 = vmatpush1.xpose.msra.mxu0 0.0
    %432 = vmatprep.subr.mxu0 0.0
    %433 = vmatpush1.xpose.msra.mxu0 0.0
    %434 = vmatprep.subr.mxu0 0.0
    %435 = vmatpush1.xpose.msra.mxu0 0.0
    %436 = vmatprep.subr.mxu0 0.0
    %437 = vmatpush1.xpose.msra.mxu0 0.0
    %438 = vmatprep.subr.mxu0 0.0
    %439 = vmatpush1.xpose.msra.mxu0 0.0
    %440 = vmatprep.subr.mxu0 0.0
    %441 = vmatpush1.xpose.msra.mxu0 0.0
    %442 = vmatprep.subr.mxu0 0.0
    %443 = vmatpush1.xpose.msra.mxu0 0.0
    %444 = vmatprep.subr.mxu0 0.0
    %445 = vmatpush1.xpose.msra.mxu0 0.0
    %446 = vmatprep.subr.mxu0 0.0
    %447 = vmatpush1.xpose.msra.mxu0 0.0
    %448 = vmatprep.subr.mxu0 0.0
    %449 = vmatpush1.xpose.msra.mxu0 0.0
    %450 = vmatprep.subr.mxu0 0.0
    %451 = vmatpush1.xpose.msra.mxu0 0.0
    %452 = vmatprep.subr.mxu0 0.0
    %453 = vmatpush1.xpose.msra.mxu0 0.0
    %454 = vmatprep.subr.mxu0 0.0
    %455 = vmatpush1.xpose.msra.mxu0 0.0
    %456 = vmatprep.subr.mxu0 0.0
    %457 = vmatpush1.xpose.msra.mxu0 0.0
    %458 = vmatprep.subr.mxu0 0.0
    %459 = vmatpush1.xpose.msra.mxu0 0.0
    %460 = vmatprep.subr.mxu0 0.0
    %461 = vmatpush1.xpose.msra.mxu0 0.0
    %462 = vmatprep.subr.mxu0 0.0
    %463 = vmatpush1.xpose.msra.mxu0 0.0
    %464 = vmatprep.subr.mxu0 0.0
    %465 = vmatpush1.xpose.msra.mxu0 0.0
    %466 = vmatprep.subr.mxu0 0.0
    %467 = vmatpush1.xpose.msra.mxu0 0.0
    %468 = vmatprep.subr.mxu0 0.0
    %469 = vmatpush1.xpose.msra.mxu0 0.0
    %470 = vmatprep.mubr.f32.mxu0 0.0
    %471 = vmatmul.mubr.f32.gmra.mrb[0].mxu0 %v402
    %v472 = vpop.f32.mrb[0].mxu0
    %v473 = vadd.f32 0.0, %v472
    %v474 = vpop.f32.mrb[0].mxu0
    %475 = vdwg.mxu0
    %476 = vrot.lane.b32.xlu0 %v164, 96
    %v477 = vpop.permute.xlu0 %476
    %v478 = vsel %vm173, %v164, 0
    %v480 = vsel %vm173, %v477, 0
    %482 = vmatprep.subr.mxu0 0.0
    %483 = vmatpush1.xpose.msra.mxu0 %v480
    %484 = vmatprep.subr.mxu0 0.0
    %485 = vmatpush1.xpose.msra.mxu0 0.0
    %486 = vmatprep.subr.mxu0 0.0
    %487 = vmatpush1.xpose.msra.mxu0 0.0
    %488 = vmatprep.subr.mxu0 0.0
    %489 = vmatpush1.xpose.msra.mxu0 0.0
    %490 = vmatprep.subr.mxu0 0.0
    %491 = vmatpush1.xpose.msra.mxu0 0.0
    %492 = vmatprep.subr.mxu0 0.0
    %493 = vmatpush1.xpose.msra.mxu0 0.0
    %494 = vmatprep.subr.mxu0 0.0
    %495 = vmatpush1.xpose.msra.mxu0 0.0
    %496 = vmatprep.subr.mxu0 0.0
    %497 = vmatpush1.xpose.msra.mxu0 0.0
    %498 = vmatprep.subr.mxu0 0.0
    %499 = vmatpush1.xpose.msra.mxu0 0.0
    %500 = vmatprep.subr.mxu0 0.0
    %501 = vmatpush1.xpose.msra.mxu0 0.0
    %502 = vmatprep.subr.mxu0 0.0
    %503 = vmatpush1.xpose.msra.mxu0 0.0
    %504 = vmatprep.subr.mxu0 0.0
    %505 = vmatpush1.xpose.msra.mxu0 0.0
    %506 = vmatprep.subr.mxu0 0.0
    %507 = vmatpush1.xpose.msra.mxu0 0.0
    %508 = vmatprep.subr.mxu0 0.0
    %509 = vmatpush1.xpose.msra.mxu0 0.0
    %510 = vmatprep.subr.mxu0 0.0
    %511 = vmatpush1.xpose.msra.mxu0 0.0
    %512 = vmatprep.subr.mxu0 0.0
    %513 = vmatpush1.xpose.msra.mxu0 0.0
    %514 = vmatprep.subr.mxu0 0.0
    %515 = vmatpush1.xpose.msra.mxu0 0.0
    %516 = vmatprep.subr.mxu0 0.0
    %517 = vmatpush1.xpose.msra.mxu0 0.0
    %518 = vmatprep.subr.mxu0 0.0
    %519 = vmatpush1.xpose.msra.mxu0 0.0
    %520 = vmatprep.subr.mxu0 0.0
    %521 = vmatpush1.xpose.msra.mxu0 0.0
    %522 = vmatprep.subr.mxu0 0.0
    %523 = vmatpush1.xpose.msra.mxu0 0.0
    %524 = vmatprep.subr.mxu0 0.0
    %525 = vmatpush1.xpose.msra.mxu0 0.0
    %526 = vmatprep.subr.mxu0 0.0
    %527 = vmatpush1.xpose.msra.mxu0 0.0
    %528 = vmatprep.subr.mxu0 0.0
    %529 = vmatpush1.xpose.msra.mxu0 0.0
    %530 = vmatprep.subr.mxu0 0.0
    %531 = vmatpush1.xpose.msra.mxu0 0.0
    %532 = vmatprep.subr.mxu0 0.0
    %533 = vmatpush1.xpose.msra.mxu0 0.0
    %534 = vmatprep.subr.mxu0 0.0
    %535 = vmatpush1.xpose.msra.mxu0 0.0
    %536 = vmatprep.subr.mxu0 0.0
    %537 = vmatpush1.xpose.msra.mxu0 0.0
    %538 = vmatprep.subr.mxu0 0.0
    %539 = vmatpush1.xpose.msra.mxu0 0.0
    %540 = vmatprep.subr.mxu0 0.0
    %541 = vmatpush1.xpose.msra.mxu0 0.0
    %542 = vmatprep.subr.mxu0 0.0
    %543 = vmatpush1.xpose.msra.mxu0 0.0
    %544 = vmatprep.subr.mxu0 0.0
    %545 = vmatpush1.xpose.msra.mxu0 0.0
    %546 = vmatprep.mubr.f32.mxu0 0.0
    %547 = vmatmul.mubr.f32.gmra.mrb[0].mxu0 %v478
    %v548 = vpop.f32.mrb[0].mxu0
    %v549 = vadd.f32 0.0, %v548
    %v550 = vpop.f32.mrb[0].mxu0
    %551 = vdwg.mxu0
    %552 = vrot.lane.b32.xlu0 %v166, 96
    %v553 = vpop.permute.xlu0 %552
    %v554 = vsel %vm173, %v166, 0
    %v556 = vsel %vm173, %v553, 0
    %558 = vmatprep.subr.mxu0 0.0
    %559 = vmatpush1.xpose.msra.mxu0 %v556
    %560 = vmatprep.subr.mxu0 0.0
    %561 = vmatpush1.xpose.msra.mxu0 0.0
    %562 = vmatprep.subr.mxu0 0.0
    %563 = vmatpush1.xpose.msra.mxu0 0.0
    %564 = vmatprep.subr.mxu0 0.0
    %565 = vmatpush1.xpose.msra.mxu0 0.0
    %566 = vmatprep.subr.mxu0 0.0
    %567 = vmatpush1.xpose.msra.mxu0 0.0
    %568 = vmatprep.subr.mxu0 0.0
    %569 = vmatpush1.xpose.msra.mxu0 0.0
    %570 = vmatprep.subr.mxu0 0.0
    %571 = vmatpush1.xpose.msra.mxu0 0.0
    %572 = vmatprep.subr.mxu0 0.0
    %573 = vmatpush1.xpose.msra.mxu0 0.0
    %574 = vmatprep.subr.mxu0 0.0
    %575 = vmatpush1.xpose.msra.mxu0 0.0
    %576 = vmatprep.subr.mxu0 0.0
    %577 = vmatpush1.xpose.msra.mxu0 0.0
    %578 = vmatprep.subr.mxu0 0.0
    %579 = vmatpush1.xpose.msra.mxu0 0.0
    %580 = vmatprep.subr.mxu0 0.0
    %581 = vmatpush1.xpose.msra.mxu0 0.0
    %582 = vmatprep.subr.mxu0 0.0
    %583 = vmatpush1.xpose.msra.mxu0 0.0
    %584 = vmatprep.subr.mxu0 0.0
    %585 = vmatpush1.xpose.msra.mxu0 0.0
    %586 = vmatprep.subr.mxu0 0.0
    %587 = vmatpush1.xpose.msra.mxu0 0.0
    %588 = vmatprep.subr.mxu0 0.0
    %589 = vmatpush1.xpose.msra.mxu0 0.0
    %590 = vmatprep.subr.mxu0 0.0
    %591 = vmatpush1.xpose.msra.mxu0 0.0
    %592 = vmatprep.subr.mxu0 0.0
    %593 = vmatpush1.xpose.msra.mxu0 0.0
    %594 = vmatprep.subr.mxu0 0.0
    %595 = vmatpush1.xpose.msra.mxu0 0.0
    %596 = vmatprep.subr.mxu0 0.0
    %597 = vmatpush1.xpose.msra.mxu0 0.0
    %598 = vmatprep.subr.mxu0 0.0
    %599 = vmatpush1.xpose.msra.mxu0 0.0
    %600 = vmatprep.subr.mxu0 0.0
    %601 = vmatpush1.xpose.msra.mxu0 0.0
    %602 = vmatprep.subr.mxu0 0.0
    %603 = vmatpush1.xpose.msra.mxu0 0.0
    %604 = vmatprep.subr.mxu0 0.0
    %605 = vmatpush1.xpose.msra.mxu0 0.0
    %606 = vmatprep.subr.mxu0 0.0
    %607 = vmatpush1.xpose.msra.mxu0 0.0
    %608 = vmatprep.subr.mxu0 0.0
    %609 = vmatpush1.xpose.msra.mxu0 0.0
    %610 = vmatprep.subr.mxu0 0.0
    %611 = vmatpush1.xpose.msra.mxu0 0.0
    %612 = vmatprep.subr.mxu0 0.0
    %613 = vmatpush1.xpose.msra.mxu0 0.0
    %614 = vmatprep.subr.mxu0 0.0
    %615 = vmatpush1.xpose.msra.mxu0 0.0
    %616 = vmatprep.subr.mxu0 0.0
    %617 = vmatpush1.xpose.msra.mxu0 0.0
    %618 = vmatprep.subr.mxu0 0.0
    %619 = vmatpush1.xpose.msra.mxu0 0.0
    %620 = vmatprep.subr.mxu0 0.0
    %621 = vmatpush1.xpose.msra.mxu0 0.0
    %622 = vmatprep.mubr.f32.mxu0 0.0
    %623 = vmatmul.mubr.f32.gmra.mrb[0].mxu0 %v554
    %v624 = vpop.f32.mrb[0].mxu0
    %v625 = vadd.f32 0.0, %v624
    %v626 = vpop.f32.mrb[0].mxu0
    %627 = vdwg.mxu0
    %628 = vrot.lane.b32.xlu0 %v168, 96
    %v629 = vpop.permute.xlu0 %628
    %v630 = vsel %vm173, %v168, 0
    %v632 = vsel %vm173, %v629, 0
    %634 = vmatprep.subr.mxu0 0.0
    %635 = vmatpush1.xpose.msra.mxu0 %v632
    %636 = vmatprep.subr.mxu0 0.0
    %637 = vmatpush1.xpose.msra.mxu0 0.0
    %638 = vmatprep.subr.mxu0 0.0
    %639 = vmatpush1.xpose.msra.mxu0 0.0
    %640 = vmatprep.subr.mxu0 0.0
    %641 = vmatpush1.xpose.msra.mxu0 0.0
    %642 = vmatprep.subr.mxu0 0.0
    %643 = vmatpush1.xpose.msra.mxu0 0.0
    %644 = vmatprep.subr.mxu0 0.0
    %645 = vmatpush1.xpose.msra.mxu0 0.0
    %646 = vmatprep.subr.mxu0 0.0
    %647 = vmatpush1.xpose.msra.mxu0 0.0
    %648 = vmatprep.subr.mxu0 0.0
    %649 = vmatpush1.xpose.msra.mxu0 0.0
    %650 = vmatprep.subr.mxu0 0.0
    %651 = vmatpush1.xpose.msra.mxu0 0.0
    %652 = vmatprep.subr.mxu0 0.0
    %653 = vmatpush1.xpose.msra.mxu0 0.0
    %654 = vmatprep.subr.mxu0 0.0
    %655 = vmatpush1.xpose.msra.mxu0 0.0
    %656 = vmatprep.subr.mxu0 0.0
    %657 = vmatpush1.xpose.msra.mxu0 0.0
    %658 = vmatprep.subr.mxu0 0.0
    %659 = vmatpush1.xpose.msra.mxu0 0.0
    %660 = vmatprep.subr.mxu0 0.0
    %661 = vmatpush1.xpose.msra.mxu0 0.0
    %662 = vmatprep.subr.mxu0 0.0
    %663 = vmatpush1.xpose.msra.mxu0 0.0
    %664 = vmatprep.subr.mxu0 0.0
    %665 = vmatpush1.xpose.msra.mxu0 0.0
    %666 = vmatprep.subr.mxu0 0.0
    %667 = vmatpush1.xpose.msra.mxu0 0.0
    %668 = vmatprep.subr.mxu0 0.0
    %669 = vmatpush1.xpose.msra.mxu0 0.0
    %670 = vmatprep.subr.mxu0 0.0
    %671 = vmatpush1.xpose.msra.mxu0 0.0
    %672 = vmatprep.subr.mxu0 0.0
    %673 = vmatpush1.xpose.msra.mxu0 0.0
    %674 = vmatprep.subr.mxu0 0.0
    %675 = vmatpush1.xpose.msra.mxu0 0.0
    %676 = vmatprep.subr.mxu0 0.0
    %677 = vmatpush1.xpose.msra.mxu0 0.0
    %678 = vmatprep.subr.mxu0 0.0
    %679 = vmatpush1.xpose.msra.mxu0 0.0
    %680 = vmatprep.subr.mxu0 0.0
    %681 = vmatpush1.xpose.msra.mxu0 0.0
    %682 = vmatprep.subr.mxu0 0.0
    %683 = vmatpush1.xpose.msra.mxu0 0.0
    %684 = vmatprep.subr.mxu0 0.0
    %685 = vmatpush1.xpose.msra.mxu0 0.0
    %686 = vmatprep.subr.mxu0 0.0
    %687 = vmatpush1.xpose.msra.mxu0 0.0
    %688 = vmatprep.subr.mxu0 0.0
    %689 = vmatpush1.xpose.msra.mxu0 0.0
    %690 = vmatprep.subr.mxu0 0.0
    %691 = vmatpush1.xpose.msra.mxu0 0.0
    %692 = vmatprep.subr.mxu0 0.0
    %693 = vmatpush1.xpose.msra.mxu0 0.0
    %694 = vmatprep.subr.mxu0 0.0
    %695 = vmatpush1.xpose.msra.mxu0 0.0
    %696 = vmatprep.subr.mxu0 0.0
    %697 = vmatpush1.xpose.msra.mxu0 0.0
    %698 = vmatprep.mubr.f32.mxu0 0.0
    %699 = vmatmul.mubr.f32.gmra.mrb[0].mxu0 %v630
    %v700 = vpop.f32.mrb[0].mxu0
    %v701 = vadd.f32 0.0, %v700
    %v702 = vpop.f32.mrb[0].mxu0
    %703 = vdwg.mxu0
    %704 = vrot.lane.b32.xlu0 %v170, 96
    %v705 = vpop.permute.xlu0 %704
    %v706 = vsel %vm173, %v170, 0
    %v708 = vsel %vm173, %v705, 0
    %710 = vmatprep.subr.mxu0 0.0
    %711 = vmatpush1.xpose.msra.mxu0 %v708
    %712 = vmatprep.subr.mxu0 0.0
    %713 = vmatpush1.xpose.msra.mxu0 0.0
    %714 = vmatprep.subr.mxu0 0.0
    %715 = vmatpush1.xpose.msra.mxu0 0.0
    %716 = vmatprep.subr.mxu0 0.0
    %717 = vmatpush1.xpose.msra.mxu0 0.0
    %718 = vmatprep.subr.mxu0 0.0
    %719 = vmatpush1.xpose.msra.mxu0 0.0
    %720 = vmatprep.subr.mxu0 0.0
    %721 = vmatpush1.xpose.msra.mxu0 0.0
    %722 = vmatprep.subr.mxu0 0.0
    %723 = vmatpush1.xpose.msra.mxu0 0.0
    %724 = vmatprep.subr.mxu0 0.0
    %725 = vmatpush1.xpose.msra.mxu0 0.0
    %726 = vmatprep.subr.mxu0 0.0
    %727 = vmatpush1.xpose.msra.mxu0 0.0
    %728 = vmatprep.subr.mxu0 0.0
    %729 = vmatpush1.xpose.msra.mxu0 0.0
    %730 = vmatprep.subr.mxu0 0.0
    %731 = vmatpush1.xpose.msra.mxu0 0.0
    %732 = vmatprep.subr.mxu0 0.0
    %733 = vmatpush1.xpose.msra.mxu0 0.0
    %734 = vmatprep.subr.mxu0 0.0
    %735 = vmatpush1.xpose.msra.mxu0 0.0
    %736 = vmatprep.subr.mxu0 0.0
    %737 = vmatpush1.xpose.msra.mxu0 0.0
    %738 = vmatprep.subr.mxu0 0.0
    %739 = vmatpush1.xpose.msra.mxu0 0.0
    %740 = vmatprep.subr.mxu0 0.0
    %741 = vmatpush1.xpose.msra.mxu0 0.0
    %742 = vmatprep.subr.mxu0 0.0
    %743 = vmatpush1.xpose.msra.mxu0 0.0
    %744 = vmatprep.subr.mxu0 0.0
    %745 = vmatpush1.xpose.msra.mxu0 0.0
    %746 = vmatprep.subr.mxu0 0.0
    %747 = vmatpush1.xpose.msra.mxu0 0.0
    %748 = vmatprep.subr.mxu0 0.0
    %749 = vmatpush1.xpose.msra.mxu0 0.0
    %750 = vmatprep.subr.mxu0 0.0
    %751 = vmatpush1.xpose.msra.mxu0 0.0
    %752 = vmatprep.subr.mxu0 0.0
    %753 = vmatpush1.xpose.msra.mxu0 0.0
    %754 = vmatprep.subr.mxu0 0.0
    %755 = vmatpush1.xpose.msra.mxu0 0.0
    %756 = vmatprep.subr.mxu0 0.0
    %757 = vmatpush1.xpose.msra.mxu0 0.0
    %758 = vmatprep.subr.mxu0 0.0
    %759 = vmatpush1.xpose.msra.mxu0 0.0
    %760 = vmatprep.subr.mxu0 0.0
    %761 = vmatpush1.xpose.msra.mxu0 0.0
    %762 = vmatprep.subr.mxu0 0.0
    %763 = vmatpush1.xpose.msra.mxu0 0.0
    %764 = vmatprep.subr.mxu0 0.0
    %765 = vmatpush1.xpose.msra.mxu0 0.0
    %766 = vmatprep.subr.mxu0 0.0
    %767 = vmatpush1.xpose.msra.mxu0 0.0
    %768 = vmatprep.subr.mxu0 0.0
    %769 = vmatpush1.xpose.msra.mxu0 0.0
    %770 = vmatprep.subr.mxu0 0.0
    %771 = vmatpush1.xpose.msra.mxu0 0.0
    %772 = vmatprep.subr.mxu0 0.0
    %773 = vmatpush1.xpose.msra.mxu0 0.0
    %774 = vmatprep.mubr.f32.mxu0 0.0
    %775 = vmatmul.mubr.f32.gmra.mrb[0].mxu0 %v706
    %v776 = vpop.f32.mrb[0].mxu0
    %v777 = vadd.f32 0.0, %v776
    %v778 = vpop.f32.mrb[0].mxu0
    %779 = vdwg.mxu0
    %v782 = vlaneseq
    %v783 = vshrl.u32 %v782, 7
    %v784 = vsub.s32 0, %v783
    %v785 = vrot.slane %v49, %v784
    %v786 = vlaneseq
    %v787 = vshrl.u32 %v786, 7
    %v788 = vsub.s32 0, %v787
    %v789 = vrot.slane %v50, %v788
    %v792 = vadd.f32 %v245, %v785
    %v793 = vadd.f32 %v321, %v789
    %v794 = vadd.f32 %v397, %v785
    %v795 = vadd.f32 %v473, %v789
    %v796 = vadd.f32 %v549, %v785
    %v797 = vadd.f32 %v625, %v789
    %v798 = vadd.f32 %v701, %v785
    %v799 = vadd.f32 %v777, %v789
    %v800 = vsel %vm173, %v792, -inf
    %801 = vmax.xlane.f32.xlu0 %v800
    %v802 = vpop.xlane.xlu0 %801
    %v803 = vsel %vm173, %v793, -inf
    %804 = vmax.xlane.f32.xlu0 %v803
    %v805 = vpop.xlane.xlu0 %804
    %v806 = vsel %vm173, %v794, -inf
    %807 = vmax.xlane.f32.xlu0 %v806
    %v808 = vpop.xlane.xlu0 %807
    %v809 = vsel %vm173, %v795, -inf
    %810 = vmax.xlane.f32.xlu0 %v809
    %v811 = vpop.xlane.xlu0 %810
    %v812 = vsel %vm173, %v796, -inf
    %813 = vmax.xlane.f32.xlu0 %v812
    %v814 = vpop.xlane.xlu0 %813
    %v815 = vsel %vm173, %v797, -inf
    %816 = vmax.xlane.f32.xlu0 %v815
    %v817 = vpop.xlane.xlu0 %816
    %v818 = vsel %vm173, %v798, -inf
    %819 = vmax.xlane.f32.xlu0 %v818
    %v820 = vpop.xlane.xlu0 %819
    %v821 = vsel %vm173, %v799, -inf
    %822 = vmax.xlane.f32.xlu0 %v821
    %v823 = vpop.xlane.xlu0 %822
    %v824 = vsub.f32 %v792, %v802
    %v825 = vsub.f32 %v793, %v805
    %v826 = vsub.f32 %v794, %v808
    %v827 = vsub.f32 %v795, %v811
    %v828 = vsub.f32 %v796, %v814
    %v829 = vsub.f32 %v797, %v817
    %v830 = vsub.f32 %v798, %v820
    %v831 = vsub.f32 %v799, %v823
    %v832 = vmul.f32 %v824, 1.442695
    %v833 = vpow.pop %v832
    %v834 = vmul.f32 %v825, 1.442695
    %v835 = vpow.pop %v834
    %v836 = vmul.f32 %v826, 1.442695
    %v837 = vpow.pop %v836
    %v838 = vmul.f32 %v827, 1.442695
    %v839 = vpow.pop %v838
    %v840 = vmul.f32 %v828, 1.442695
    %v841 = vpow.pop %v840
    %v842 = vmul.f32 %v829, 1.442695
    %v843 = vpow.pop %v842
    %v844 = vmul.f32 %v830, 1.442695
    %v845 = vpow.pop %v844
    %v846 = vmul.f32 %v831, 1.442695
    %v847 = vpow.pop %v846
    %v848 = vsel %vm173, %v833, 0.0
    %849 = vadd.xlane.f32.xlu0 %v848
    %v850 = vpop.xlane.xlu0 %849
    %v851 = vsel %vm173, %v835, 0.0
    %852 = vadd.xlane.f32.xlu0 %v851
    %v853 = vpop.xlane.xlu0 %852
    %v854 = vsel %vm173, %v837, 0.0
    %855 = vadd.xlane.f32.xlu0 %v854
    %v856 = vpop.xlane.xlu0 %855
    %v857 = vsel %vm173, %v839, 0.0
    %858 = vadd.xlane.f32.xlu0 %v857
    %v859 = vpop.xlane.xlu0 %858
    %v860 = vsel %vm173, %v841, 0.0
    %861 = vadd.xlane.f32.xlu0 %v860
    %v862 = vpop.xlane.xlu0 %861
    %v863 = vsel %vm173, %v843, 0.0
    %864 = vadd.xlane.f32.xlu0 %v863
    %v865 = vpop.xlane.xlu0 %864
    %v866 = vsel %vm173, %v845, 0.0
    %867 = vadd.xlane.f32.xlu0 %v866
    %v868 = vpop.xlane.xlu0 %867
    %v869 = vsel %vm173, %v847, 0.0
    %870 = vadd.xlane.f32.xlu0 %v869
    %v871 = vpop.xlane.xlu0 %870
    %v872 = vrcp.pop %v850
    %v873 = vrcp.pop %v853
    %v874 = vrcp.pop %v856
    %v875 = vrcp.pop %v859
    %v876 = vrcp.pop %v862
    %v877 = vrcp.pop %v865
    %v878 = vrcp.pop %v868
    %v879 = vrcp.pop %v871
    %v880 = vmul.f32 %v833, %v872
    %v881 = vmul.f32 %v835, %v873
    %v882 = vmul.f32 %v837, %v874
    %v883 = vmul.f32 %v839, %v875
    %v884 = vmul.f32 %v841, %v876
    %v885 = vmul.f32 %v843, %v877
    %v886 = vmul.f32 %v845, %v878
    %v887 = vmul.f32 %v847, %v879
    %888 = vrot.lane.b32.xlu0 %v149, 64
    %v889 = vpop.permute.xlu0 %888
    %v892 = vsel %vm173, %v880, 0
    %894 = vmatprep.subr.mxu0 0.0
    %895 = vmatpush1.msra.mxu0 %v889
    %896 = vmatprep.subr.mxu0 0.0
    %897 = vmatpush1.msra.mxu0 0.0
    %898 = vmatprep.subr.mxu0 0.0
    %899 = vmatpush1.msra.mxu0 0.0
    %900 = vmatprep.subr.mxu0 0.0
    %901 = vmatpush1.msra.mxu0 0.0
    %902 = vmatprep.subr.mxu0 0.0
    %903 = vmatpush1.msra.mxu0 0.0
    %904 = vmatprep.subr.mxu0 0.0
    %905 = vmatpush1.msra.mxu0 0.0
    %906 = vmatprep.subr.mxu0 0.0
    %907 = vmatpush1.msra.mxu0 0.0
    %908 = vmatprep.subr.mxu0 0.0
    %909 = vmatpush1.msra.mxu0 0.0
    %910 = vmatprep.subr.mxu0 0.0
    %911 = vmatpush1.msra.mxu0 0.0
    %912 = vmatprep.subr.mxu0 0.0
    %913 = vmatpush1.msra.mxu0 0.0
    %914 = vmatprep.subr.mxu0 0.0
    %915 = vmatpush1.msra.mxu0 0.0
    %916 = vmatprep.subr.mxu0 0.0
    %917 = vmatpush1.msra.mxu0 0.0
    %918 = vmatprep.subr.mxu0 0.0
    %919 = vmatpush1.msra.mxu0 0.0
    %920 = vmatprep.subr.mxu0 0.0
    %921 = vmatpush1.msra.mxu0 0.0
    %922 = vmatprep.subr.mxu0 0.0
    %923 = vmatpush1.msra.mxu0 0.0
    %924 = vmatprep.subr.mxu0 0.0
    %925 = vmatpush1.msra.mxu0 0.0
    %926 = vmatprep.subr.mxu0 0.0
    %927 = vmatpush1.msra.mxu0 0.0
    %928 = vmatprep.subr.mxu0 0.0
    %929 = vmatpush1.msra.mxu0 0.0
    %930 = vmatprep.subr.mxu0 0.0
    %931 = vmatpush1.msra.mxu0 0.0
    %932 = vmatprep.subr.mxu0 0.0
    %933 = vmatpush1.msra.mxu0 0.0
    %934 = vmatprep.subr.mxu0 0.0
    %935 = vmatpush1.msra.mxu0 0.0
    %936 = vmatprep.subr.mxu0 0.0
    %937 = vmatpush1.msra.mxu0 0.0
    %938 = vmatprep.subr.mxu0 0.0
    %939 = vmatpush1.msra.mxu0 0.0
    %940 = vmatprep.subr.mxu0 0.0
    %941 = vmatpush1.msra.mxu0 0.0
    %942 = vmatprep.subr.mxu0 0.0
    %943 = vmatpush1.msra.mxu0 0.0
    %944 = vmatprep.subr.mxu0 0.0
    %945 = vmatpush1.msra.mxu0 0.0
    %946 = vmatprep.subr.mxu0 0.0
    %947 = vmatpush1.msra.mxu0 0.0
    %948 = vmatprep.subr.mxu0 0.0
    %949 = vmatpush1.msra.mxu0 0.0
    %950 = vmatprep.subr.mxu0 0.0
    %951 = vmatpush1.msra.mxu0 0.0
    %952 = vmatprep.subr.mxu0 0.0
    %953 = vmatpush1.msra.mxu0 0.0
    %954 = vmatprep.subr.mxu0 0.0
    %955 = vmatpush1.msra.mxu0 0.0
    %956 = vmatprep.subr.mxu0 0.0
    %957 = vmatpush1.msra.mxu0 0.0
    %958 = vmatprep.mubr.f32.mxu0 0.0
    %959 = vmatmul.mubr.f32.gmra.mrb[0].mxu0 %v892
    %v960 = vpop.f32.mrb[0].mxu0
    %v961 = vadd.f32 0.0, %v960
    %v962 = vpop.f32.mrb[0].mxu0
    %963 = vdwg.mxu0
    %964 = vrot.lane.b32.xlu0 %v154, 64
    %v965 = vpop.permute.xlu0 %964
    %v968 = vsel %vm173, %v881, 0
    %970 = vmatprep.subr.mxu0 0.0
    %971 = vmatpush1.msra.mxu0 %v965
    %972 = vmatprep.subr.mxu0 0.0
    %973 = vmatpush1.msra.mxu0 0.0
    %974 = vmatprep.subr.mxu0 0.0
    %975 = vmatpush1.msra.mxu0 0.0
    %976 = vmatprep.subr.mxu0 0.0
    %977 = vmatpush1.msra.mxu0 0.0
    %978 = vmatprep.subr.mxu0 0.0
    %979 = vmatpush1.msra.mxu0 0.0
    %980 = vmatprep.subr.mxu0 0.0
    %981 = vmatpush1.msra.mxu0 0.0
    %982 = vmatprep.subr.mxu0 0.0
    %983 = vmatpush1.msra.mxu0 0.0
    %984 = vmatprep.subr.mxu0 0.0
    %985 = vmatpush1.msra.mxu0 0.0
    %986 = vmatprep.subr.mxu0 0.0
    %987 = vmatpush1.msra.mxu0 0.0
    %988 = vmatprep.subr.mxu0 0.0
    %989 = vmatpush1.msra.mxu0 0.0
    %990 = vmatprep.subr.mxu0 0.0
    %991 = vmatpush1.msra.mxu0 0.0
    %992 = vmatprep.subr.mxu0 0.0
    %993 = vmatpush1.msra.mxu0 0.0
    %994 = vmatprep.subr.mxu0 0.0
    %995 = vmatpush1.msra.mxu0 0.0
    %996 = vmatprep.subr.mxu0 0.0
    %997 = vmatpush1.msra.mxu0 0.0
    %998 = vmatprep.subr.mxu0 0.0
    %999 = vmatpush1.msra.mxu0 0.0
    %1000 = vmatprep.subr.mxu0 0.0
    %1001 = vmatpush1.msra.mxu0 0.0
    %1002 = vmatprep.subr.mxu0 0.0
    %1003 = vmatpush1.msra.mxu0 0.0
    %1004 = vmatprep.subr.mxu0 0.0
    %1005 = vmatpush1.msra.mxu0 0.0
    %1006 = vmatprep.subr.mxu0 0.0
    %1007 = vmatpush1.msra.mxu0 0.0
    %1008 = vmatprep.subr.mxu0 0.0
    %1009 = vmatpush1.msra.mxu0 0.0
    %1010 = vmatprep.subr.mxu0 0.0
    %1011 = vmatpush1.msra.mxu0 0.0
    %1012 = vmatprep.subr.mxu0 0.0
    %1013 = vmatpush1.msra.mxu0 0.0
    %1014 = vmatprep.subr.mxu0 0.0
    %1015 = vmatpush1.msra.mxu0 0.0
    %1016 = vmatprep.subr.mxu0 0.0
    %1017 = vmatpush1.msra.mxu0 0.0
    %1018 = vmatprep.subr.mxu0 0.0
    %1019 = vmatpush1.msra.mxu0 0.0
    %1020 = vmatprep.subr.mxu0 0.0
    %1021 = vmatpush1.msra.mxu0 0.0
    %1022 = vmatprep.subr.mxu0 0.0
    %1023 = vmatpush1.msra.mxu0 0.0
    %1024 = vmatprep.subr.mxu0 0.0
    %1025 = vmatpush1.msra.mxu0 0.0
    %1026 = vmatprep.subr.mxu0 0.0
    %1027 = vmatpush1.msra.mxu0 0.0
    %1028 = vmatprep.subr.mxu0 0.0
    %1029 = vmatpush1.msra.mxu0 0.0
    %1030 = vmatprep.subr.mxu0 0.0
    %1031 = vmatpush1.msra.mxu0 0.0
    %1032 = vmatprep.subr.mxu0 0.0
    %1033 = vmatpush1.msra.mxu0 0.0
    %1034 = vmatprep.mubr.f32.mxu0 0.0
    %1035 = vmatmul.mubr.f32.gmra.mrb[0].mxu0 %v968
    %v1036 = vpop.f32.mrb[0].mxu0
    %v1037 = vadd.f32 0.0, %v1036
    %v1038 = vpop.f32.mrb[0].mxu0
    %1039 = vdwg.mxu0
    %1040 = vrot.lane.b32.xlu0 %v160, 64
    %v1041 = vpop.permute.xlu0 %1040
    %v1044 = vsel %vm173, %v882, 0
    %1046 = vmatprep.subr.mxu0 0.0
    %1047 = vmatpush1.msra.mxu0 %v1041
    %1048 = vmatprep.subr.mxu0 0.0
    %1049 = vmatpush1.msra.mxu0 0.0
    %1050 = vmatprep.subr.mxu0 0.0
    %1051 = vmatpush1.msra.mxu0 0.0
    %1052 = vmatprep.subr.mxu0 0.0
    %1053 = vmatpush1.msra.mxu0 0.0
    %1054 = vmatprep.subr.mxu0 0.0
    %1055 = vmatpush1.msra.mxu0 0.0
    %1056 = vmatprep.subr.mxu0 0.0
    %1057 = vmatpush1.msra.mxu0 0.0
    %1058 = vmatprep.subr.mxu0 0.0
    %1059 = vmatpush1.msra.mxu0 0.0
    %1060 = vmatprep.subr.mxu0 0.0
    %1061 = vmatpush1.msra.mxu0 0.0
    %1062 = vmatprep.subr.mxu0 0.0
    %1063 = vmatpush1.msra.mxu0 0.0
    %1064 = vmatprep.subr.mxu0 0.0
    %1065 = vmatpush1.msra.mxu0 0.0
    %1066 = vmatprep.subr.mxu0 0.0
    %1067 = vmatpush1.msra.mxu0 0.0
    %1068 = vmatprep.subr.mxu0 0.0
    %1069 = vmatpush1.msra.mxu0 0.0
    %1070 = vmatprep.subr.mxu0 0.0
    %1071 = vmatpush1.msra.mxu0 0.0
    %1072 = vmatprep.subr.mxu0 0.0
    %1073 = vmatpush1.msra.mxu0 0.0
    %1074 = vmatprep.subr.mxu0 0.0
    %1075 = vmatpush1.msra.mxu0 0.0
    %1076 = vmatprep.subr.mxu0 0.0
    %1077 = vmatpush1.msra.mxu0 0.0
    %1078 = vmatprep.subr.mxu0 0.0
    %1079 = vmatpush1.msra.mxu0 0.0
    %1080 = vmatprep.subr.mxu0 0.0
    %1081 = vmatpush1.msra.mxu0 0.0
    %1082 = vmatprep.subr.mxu0 0.0
    %1083 = vmatpush1.msra.mxu0 0.0
    %1084 = vmatprep.subr.mxu0 0.0
    %1085 = vmatpush1.msra.mxu0 0.0
    %1086 = vmatprep.subr.mxu0 0.0
    %1087 = vmatpush1.msra.mxu0 0.0
    %1088 = vmatprep.subr.mxu0 0.0
    %1089 = vmatpush1.msra.mxu0 0.0
    %1090 = vmatprep.subr.mxu0 0.0
    %1091 = vmatpush1.msra.mxu0 0.0
    %1092 = vmatprep.subr.mxu0 0.0
    %1093 = vmatpush1.msra.mxu0 0.0
    %1094 = vmatprep.subr.mxu0 0.0
    %1095 = vmatpush1.msra.mxu0 0.0
    %1096 = vmatprep.subr.mxu0 0.0
    %1097 = vmatpush1.msra.mxu0 0.0
    %1098 = vmatprep.subr.mxu0 0.0
    %1099 = vmatpush1.msra.mxu0 0.0
    %1100 = vmatprep.subr.mxu0 0.0
    %1101 = vmatpush1.msra.mxu0 0.0
    %1102 = vmatprep.subr.mxu0 0.0
    %1103 = vmatpush1.msra.mxu0 0.0
    %1104 = vmatprep.subr.mxu0 0.0
    %1105 = vmatpush1.msra.mxu0 0.0
    %1106 = vmatprep.subr.mxu0 0.0
    %1107 = vmatpush1.msra.mxu0 0.0
    %1108 = vmatprep.subr.mxu0 0.0
    %1109 = vmatpush1.msra.mxu0 0.0
    %1110 = vmatprep.mubr.f32.mxu0 0.0
    %1111 = vmatmul.mubr.f32.gmra.mrb[0].mxu0 %v1044
    %v1112 = vpop.f32.mrb[0].mxu0
    %v1113 = vadd.f32 0.0, %v1112
    %v1114 = vpop.f32.mrb[0].mxu0
    %1115 = vdwg.mxu0
    %1116 = vrot.lane.b32.xlu0 %v162, 64
    %v1117 = vpop.permute.xlu0 %1116
    %v1120 = vsel %vm173, %v883, 0
    %1122 = vmatprep.subr.mxu0 0.0
    %1123 = vmatpush1.msra.mxu0 %v1117
    %1124 = vmatprep.subr.mxu0 0.0
    %1125 = vmatpush1.msra.mxu0 0.0
    %1126 = vmatprep.subr.mxu0 0.0
    %1127 = vmatpush1.msra.mxu0 0.0
    %1128 = vmatprep.subr.mxu0 0.0
    %1129 = vmatpush1.msra.mxu0 0.0
    %1130 = vmatprep.subr.mxu0 0.0
    %1131 = vmatpush1.msra.mxu0 0.0
    %1132 = vmatprep.subr.mxu0 0.0
    %1133 = vmatpush1.msra.mxu0 0.0
    %1134 = vmatprep.subr.mxu0 0.0
    %1135 = vmatpush1.msra.mxu0 0.0
    %1136 = vmatprep.subr.mxu0 0.0
    %1137 = vmatpush1.msra.mxu0 0.0
    %1138 = vmatprep.subr.mxu0 0.0
    %1139 = vmatpush1.msra.mxu0 0.0
    %1140 = vmatprep.subr.mxu0 0.0
    %1141 = vmatpush1.msra.mxu0 0.0
    %1142 = vmatprep.subr.mxu0 0.0
    %1143 = vmatpush1.msra.mxu0 0.0
    %1144 = vmatprep.subr.mxu0 0.0
    %1145 = vmatpush1.msra.mxu0 0.0
    %1146 = vmatprep.subr.mxu0 0.0
    %1147 = vmatpush1.msra.mxu0 0.0
    %1148 = vmatprep.subr.mxu0 0.0
    %1149 = vmatpush1.msra.mxu0 0.0
    %1150 = vmatprep.subr.mxu0 0.0
    %1151 = vmatpush1.msra.mxu0 0.0
    %1152 = vmatprep.subr.mxu0 0.0
    %1153 = vmatpush1.msra.mxu0 0.0
    %1154 = vmatprep.subr.mxu0 0.0
    %1155 = vmatpush1.msra.mxu0 0.0
    %1156 = vmatprep.subr.mxu0 0.0
    %1157 = vmatpush1.msra.mxu0 0.0
    %1158 = vmatprep.subr.mxu0 0.0
    %1159 = vmatpush1.msra.mxu0 0.0
    %1160 = vmatprep.subr.mxu0 0.0
    %1161 = vmatpush1.msra.mxu0 0.0
    %1162 = vmatprep.subr.mxu0 0.0
    %1163 = vmatpush1.msra.mxu0 0.0
    %1164 = vmatprep.subr.mxu0 0.0
    %1165 = vmatpush1.msra.mxu0 0.0
    %1166 = vmatprep.subr.mxu0 0.0
    %1167 = vmatpush1.msra.mxu0 0.0
    %1168 = vmatprep.subr.mxu0 0.0
    %1169 = vmatpush1.msra.mxu0 0.0
    %1170 = vmatprep.subr.mxu0 0.0
    %1171 = vmatpush1.msra.mxu0 0.0
    %1172 = vmatprep.subr.mxu0 0.0
    %1173 = vmatpush1.msra.mxu0 0.0
    %1174 = vmatprep.subr.mxu0 0.0
    %1175 = vmatpush1.msra.mxu0 0.0
    %1176 = vmatprep.subr.mxu0 0.0
    %1177 = vmatpush1.msra.mxu0 0.0
    %1178 = vmatprep.subr.mxu0 0.0
    %1179 = vmatpush1.msra.mxu0 0.0
    %1180 = vmatprep.subr.mxu0 0.0
    %1181 = vmatpush1.msra.mxu0 0.0
    %1182 = vmatprep.subr.mxu0 0.0
    %1183 = vmatpush1.msra.mxu0 0.0
    %1184 = vmatprep.subr.mxu0 0.0
    %1185 = vmatpush1.msra.mxu0 0.0
    %1186 = vmatprep.mubr.f32.mxu0 0.0
    %1187 = vmatmul.mubr.f32.gmra.mrb[0].mxu0 %v1120
    %v1188 = vpop.f32.mrb[0].mxu0
    %v1189 = vadd.f32 0.0, %v1188
    %v1190 = vpop.f32.mrb[0].mxu0
    %1191 = vdwg.mxu0
    %1192 = vrot.lane.b32.xlu0 %v164, 64
    %v1193 = vpop.permute.xlu0 %1192
    %v1196 = vsel %vm173, %v884, 0
    %1198 = vmatprep.subr.mxu0 0.0
    %1199 = vmatpush1.msra.mxu0 %v1193
    %1200 = vmatprep.subr.mxu0 0.0
    %1201 = vmatpush1.msra.mxu0 0.0
    %1202 = vmatprep.subr.mxu0 0.0
    %1203 = vmatpush1.msra.mxu0 0.0
    %1204 = vmatprep.subr.mxu0 0.0
    %1205 = vmatpush1.msra.mxu0 0.0
    %1206 = vmatprep.subr.mxu0 0.0
    %1207 = vmatpush1.msra.mxu0 0.0
    %1208 = vmatprep.subr.mxu0 0.0
    %1209 = vmatpush1.msra.mxu0 0.0
    %1210 = vmatprep.subr.mxu0 0.0
    %1211 = vmatpush1.msra.mxu0 0.0
    %1212 = vmatprep.subr.mxu0 0.0
    %1213 = vmatpush1.msra.mxu0 0.0
    %1214 = vmatprep.subr.mxu0 0.0
    %1215 = vmatpush1.msra.mxu0 0.0
    %1216 = vmatprep.subr.mxu0 0.0
    %1217 = vmatpush1.msra.mxu0 0.0
    %1218 = vmatprep.subr.mxu0 0.0
    %1219 = vmatpush1.msra.mxu0 0.0
    %1220 = vmatprep.subr.mxu0 0.0
    %1221 = vmatpush1.msra.mxu0 0.0
    %1222 = vmatprep.subr.mxu0 0.0
    %1223 = vmatpush1.msra.mxu0 0.0
    %1224 = vmatprep.subr.mxu0 0.0
    %1225 = vmatpush1.msra.mxu0 0.0
    %1226 = vmatprep.subr.mxu0 0.0
    %1227 = vmatpush1.msra.mxu0 0.0
    %1228 = vmatprep.subr.mxu0 0.0
    %1229 = vmatpush1.msra.mxu0 0.0
    %1230 = vmatprep.subr.mxu0 0.0
    %1231 = vmatpush1.msra.mxu0 0.0
    %1232 = vmatprep.subr.mxu0 0.0
    %1233 = vmatpush1.msra.mxu0 0.0
    %1234 = vmatprep.subr.mxu0 0.0
    %1235 = vmatpush1.msra.mxu0 0.0
    %1236 = vmatprep.subr.mxu0 0.0
    %1237 = vmatpush1.msra.mxu0 0.0
    %1238 = vmatprep.subr.mxu0 0.0
    %1239 = vmatpush1.msra.mxu0 0.0
    %1240 = vmatprep.subr.mxu0 0.0
    %1241 = vmatpush1.msra.mxu0 0.0
    %1242 = vmatprep.subr.mxu0 0.0
    %1243 = vmatpush1.msra.mxu0 0.0
    %1244 = vmatprep.subr.mxu0 0.0
    %1245 = vmatpush1.msra.mxu0 0.0
    %1246 = vmatprep.subr.mxu0 0.0
    %1247 = vmatpush1.msra.mxu0 0.0
    %1248 = vmatprep.subr.mxu0 0.0
    %1249 = vmatpush1.msra.mxu0 0.0
    %1250 = vmatprep.subr.mxu0 0.0
    %1251 = vmatpush1.msra.mxu0 0.0
    %1252 = vmatprep.subr.mxu0 0.0
    %1253 = vmatpush1.msra.mxu0 0.0
    %1254 = vmatprep.subr.mxu0 0.0
    %1255 = vmatpush1.msra.mxu0 0.0
    %1256 = vmatprep.subr.mxu0 0.0
    %1257 = vmatpush1.msra.mxu0 0.0
    %1258 = vmatprep.subr.mxu0 0.0
    %1259 = vmatpush1.msra.mxu0 0.0
    %1260 = vmatprep.subr.mxu0 0.0
    %1261 = vmatpush1.msra.mxu0 0.0
    %1262 = vmatprep.mubr.f32.mxu0 0.0
    %1263 = vmatmul.mubr.f32.gmra.mrb[0].mxu0 %v1196
    %v1264 = vpop.f32.mrb[0].mxu0
    %v1265 = vadd.f32 0.0, %v1264
    %v1266 = vpop.f32.mrb[0].mxu0
    %1267 = vdwg.mxu0
    %1268 = vrot.lane.b32.xlu0 %v166, 64
    %v1269 = vpop.permute.xlu0 %1268
    %v1272 = vsel %vm173, %v885, 0
    %1274 = vmatprep.subr.mxu0 0.0
    %1275 = vmatpush1.msra.mxu0 %v1269
    %1276 = vmatprep.subr.mxu0 0.0
    %1277 = vmatpush1.msra.mxu0 0.0
    %1278 = vmatprep.subr.mxu0 0.0
    %1279 = vmatpush1.msra.mxu0 0.0
    %1280 = vmatprep.subr.mxu0 0.0
    %1281 = vmatpush1.msra.mxu0 0.0
    %1282 = vmatprep.subr.mxu0 0.0
    %1283 = vmatpush1.msra.mxu0 0.0
    %1284 = vmatprep.subr.mxu0 0.0
    %1285 = vmatpush1.msra.mxu0 0.0
    %1286 = vmatprep.subr.mxu0 0.0
    %1287 = vmatpush1.msra.mxu0 0.0
    %1288 = vmatprep.subr.mxu0 0.0
    %1289 = vmatpush1.msra.mxu0 0.0
    %1290 = vmatprep.subr.mxu0 0.0
    %1291 = vmatpush1.msra.mxu0 0.0
    %1292 = vmatprep.subr.mxu0 0.0
    %1293 = vmatpush1.msra.mxu0 0.0
    %1294 = vmatprep.subr.mxu0 0.0
    %1295 = vmatpush1.msra.mxu0 0.0
    %1296 = vmatprep.subr.mxu0 0.0
    %1297 = vmatpush1.msra.mxu0 0.0
    %1298 = vmatprep.subr.mxu0 0.0
    %1299 = vmatpush1.msra.mxu0 0.0
    %1300 = vmatprep.subr.mxu0 0.0
    %1301 = vmatpush1.msra.mxu0 0.0
    %1302 = vmatprep.subr.mxu0 0.0
    %1303 = vmatpush1.msra.mxu0 0.0
    %1304 = vmatprep.subr.mxu0 0.0
    %1305 = vmatpush1.msra.mxu0 0.0
    %1306 = vmatprep.subr.mxu0 0.0
    %1307 = vmatpush1.msra.mxu0 0.0
    %1308 = vmatprep.subr.mxu0 0.0
    %1309 = vmatpush1.msra.mxu0 0.0
    %1310 = vmatprep.subr.mxu0 0.0
    %1311 = vmatpush1.msra.mxu0 0.0
    %1312 = vmatprep.subr.mxu0 0.0
    %1313 = vmatpush1.msra.mxu0 0.0
    %1314 = vmatprep.subr.mxu0 0.0
    %1315 = vmatpush1.msra.mxu0 0.0
    %1316 = vmatprep.subr.mxu0 0.0
    %1317 = vmatpush1.msra.mxu0 0.0
    %1318 = vmatprep.subr.mxu0 0.0
    %1319 = vmatpush1.msra.mxu0 0.0
    %1320 = vmatprep.subr.mxu0 0.0
    %1321 = vmatpush1.msra.mxu0 0.0
    %1322 = vmatprep.subr.mxu0 0.0
    %1323 = vmatpush1.msra.mxu0 0.0
    %1324 = vmatprep.subr.mxu0 0.0
    %1325 = vmatpush1.msra.mxu0 0.0
    %1326 = vmatprep.subr.mxu0 0.0
    %1327 = vmatpush1.msra.mxu0 0.0
    %1328 = vmatprep.subr.mxu0 0.0
    %1329 = vmatpush1.msra.mxu0 0.0
    %1330 = vmatprep.subr.mxu0 0.0
    %1331 = vmatpush1.msra.mxu0 0.0
    %1332 = vmatprep.subr.mxu0 0.0
    %1333 = vmatpush1.msra.mxu0 0.0
    %1334 = vmatprep.subr.mxu0 0.0
    %1335 = vmatpush1.msra.mxu0 0.0
    %1336 = vmatprep.subr.mxu0 0.0
    %1337 = vmatpush1.msra.mxu0 0.0
    %1338 = vmatprep.mubr.f32.mxu0 0.0
    %1339 = vmatmul.mubr.f32.gmra.mrb[0].mxu0 %v1272
    %v1340 = vpop.f32.mrb[0].mxu0
    %v1341 = vadd.f32 0.0, %v1340
    %v1342 = vpop.f32.mrb[0].mxu0
    %1343 = vdwg.mxu0
    %1344 = vrot.lane.b32.xlu0 %v168, 64
    %v1345 = vpop.permute.xlu0 %1344
    %v1348 = vsel %vm173, %v886, 0
    %1350 = vmatprep.subr.mxu0 0.0
    %1351 = vmatpush1.msra.mxu0 %v1345
    %1352 = vmatprep.subr.mxu0 0.0
    %1353 = vmatpush1.msra.mxu0 0.0
    %1354 = vmatprep.subr.mxu0 0.0
    %1355 = vmatpush1.msra.mxu0 0.0
    %1356 = vmatprep.subr.mxu0 0.0
    %1357 = vmatpush1.msra.mxu0 0.0
    %1358 = vmatprep.subr.mxu0 0.0
    %1359 = vmatpush1.msra.mxu0 0.0
    %1360 = vmatprep.subr.mxu0 0.0
    %1361 = vmatpush1.msra.mxu0 0.0
    %1362 = vmatprep.subr.mxu0 0.0
    %1363 = vmatpush1.msra.mxu0 0.0
    %1364 = vmatprep.subr.mxu0 0.0
    %1365 = vmatpush1.msra.mxu0 0.0
    %1366 = vmatprep.subr.mxu0 0.0
    %1367 = vmatpush1.msra.mxu0 0.0
    %1368 = vmatprep.subr.mxu0 0.0
    %1369 = vmatpush1.msra.mxu0 0.0
    %1370 = vmatprep.subr.mxu0 0.0
    %1371 = vmatpush1.msra.mxu0 0.0
    %1372 = vmatprep.subr.mxu0 0.0
    %1373 = vmatpush1.msra.mxu0 0.0
    %1374 = vmatprep.subr.mxu0 0.0
    %1375 = vmatpush1.msra.mxu0 0.0
    %1376 = vmatprep.subr.mxu0 0.0
    %1377 = vmatpush1.msra.mxu0 0.0
    %1378 = vmatprep.subr.mxu0 0.0
    %1379 = vmatpush1.msra.mxu0 0.0
    %1380 = vmatprep.subr.mxu0 0.0
    %1381 = vmatpush1.msra.mxu0 0.0
    %1382 = vmatprep.subr.mxu0 0.0
    %1383 = vmatpush1.msra.mxu0 0.0
    %1384 = vmatprep.subr.mxu0 0.0
    %1385 = vmatpush1.msra.mxu0 0.0
    %1386 = vmatprep.subr.mxu0 0.0
    %1387 = vmatpush1.msra.mxu0 0.0
    %1388 = vmatprep.subr.mxu0 0.0
    %1389 = vmatpush1.msra.mxu0 0.0
    %1390 = vmatprep.subr.mxu0 0.0
    %1391 = vmatpush1.msra.mxu0 0.0
    %1392 = vmatprep.subr.mxu0 0.0
    %1393 = vmatpush1.msra.mxu0 0.0
    %1394 = vmatprep.subr.mxu0 0.0
    %1395 = vmatpush1.msra.mxu0 0.0
    %1396 = vmatprep.subr.mxu0 0.0
    %1397 = vmatpush1.msra.mxu0 0.0
    %1398 = vmatprep.subr.mxu0 0.0
    %1399 = vmatpush1.msra.mxu0 0.0
    %1400 = vmatprep.subr.mxu0 0.0
    %1401 = vmatpush1.msra.mxu0 0.0
    %1402 = vmatprep.subr.mxu0 0.0
    %1403 = vmatpush1.msra.mxu0 0.0
    %1404 = vmatprep.subr.mxu0 0.0
    %1405 = vmatpush1.msra.mxu0 0.0
    %1406 = vmatprep.subr.mxu0 0.0
    %1407 = vmatpush1.msra.mxu0 0.0
    %1408 = vmatprep.subr.mxu0 0.0
    %1409 = vmatpush1.msra.mxu0 0.0
    %1410 = vmatprep.subr.mxu0 0.0
    %1411 = vmatpush1.msra.mxu0 0.0
    %1412 = vmatprep.subr.mxu0 0.0
    %1413 = vmatpush1.msra.mxu0 0.0
    %1414 = vmatprep.mubr.f32.mxu0 0.0
    %1415 = vmatmul.mubr.f32.gmra.mrb[0].mxu0 %v1348
    %v1416 = vpop.f32.mrb[0].mxu0
    %v1417 = vadd.f32 0.0, %v1416
    %v1418 = vpop.f32.mrb[0].mxu0
    %1419 = vdwg.mxu0
    %1420 = vrot.lane.b32.xlu0 %v170, 64
    %v1421 = vpop.permute.xlu0 %1420
    %v1424 = vsel %vm173, %v887, 0
    %1426 = vmatprep.subr.mxu0 0.0
    %1427 = vmatpush1.msra.mxu0 %v1421
    %1428 = vmatprep.subr.mxu0 0.0
    %1429 = vmatpush1.msra.mxu0 0.0
    %1430 = vmatprep.subr.mxu0 0.0
    %1431 = vmatpush1.msra.mxu0 0.0
    %1432 = vmatprep.subr.mxu0 0.0
    %1433 = vmatpush1.msra.mxu0 0.0
    %1434 = vmatprep.subr.mxu0 0.0
    %1435 = vmatpush1.msra.mxu0 0.0
    %1436 = vmatprep.subr.mxu0 0.0
    %1437 = vmatpush1.msra.mxu0 0.0
    %1438 = vmatprep.subr.mxu0 0.0
    %1439 = vmatpush1.msra.mxu0 0.0
    %1440 = vmatprep.subr.mxu0 0.0
    %1441 = vmatpush1.msra.mxu0 0.0
    %1442 = vmatprep.subr.mxu0 0.0
    %1443 = vmatpush1.msra.mxu0 0.0
    %1444 = vmatprep.subr.mxu0 0.0
    %1445 = vmatpush1.msra.mxu0 0.0
    %1446 = vmatprep.subr.mxu0 0.0
    %1447 = vmatpush1.msra.mxu0 0.0
    %1448 = vmatprep.subr.mxu0 0.0
    %1449 = vmatpush1.msra.mxu0 0.0
    %1450 = vmatprep.subr.mxu0 0.0
    %1451 = vmatpush1.msra.mxu0 0.0
    %1452 = vmatprep.subr.mxu0 0.0
    %1453 = vmatpush1.msra.mxu0 0.0
    %1454 = vmatprep.subr.mxu0 0.0
    %1455 = vmatpush1.msra.mxu0 0.0
    %1456 = vmatprep.subr.mxu0 0.0
    %1457 = vmatpush1.msra.mxu0 0.0
    %1458 = vmatprep.subr.mxu0 0.0
    %1459 = vmatpush1.msra.mxu0 0.0
    %1460 = vmatprep.subr.mxu0 0.0
    %1461 = vmatpush1.msra.mxu0 0.0
    %1462 = vmatprep.subr.mxu0 0.0
    %1463 = vmatpush1.msra.mxu0 0.0
    %1464 = vmatprep.subr.mxu0 0.0
    %1465 = vmatpush1.msra.mxu0 0.0
    %1466 = vmatprep.subr.mxu0 0.0
    %1467 = vmatpush1.msra.mxu0 0.0
    %1468 = vmatprep.subr.mxu0 0.0
    %1469 = vmatpush1.msra.mxu0 0.0
    %1470 = vmatprep.subr.mxu0 0.0
    %1471 = vmatpush1.msra.mxu0 0.0
    %1472 = vmatprep.subr.mxu0 0.0
    %1473 = vmatpush1.msra.mxu0 0.0
    %1474 = vmatprep.subr.mxu0 0.0
    %1475 = vmatpush1.msra.mxu0 0.0
    %1476 = vmatprep.subr.mxu0 0.0
    %1477 = vmatpush1.msra.mxu0 0.0
    %1478 = vmatprep.subr.mxu0 0.0
    %1479 = vmatpush1.msra.mxu0 0.0
    %1480 = vmatprep.subr.mxu0 0.0
    %1481 = vmatpush1.msra.mxu0 0.0
    %1482 = vmatprep.subr.mxu0 0.0
    %1483 = vmatpush1.msra.mxu0 0.0
    %1484 = vmatprep.subr.mxu0 0.0
    %1485 = vmatpush1.msra.mxu0 0.0
    %1486 = vmatprep.subr.mxu0 0.0
    %1487 = vmatpush1.msra.mxu0 0.0
    %1488 = vmatprep.subr.mxu0 0.0
    %1489 = vmatpush1.msra.mxu0 0.0
    %1490 = vmatprep.mubr.f32.mxu0 0.0
    %1491 = vmatmul.mubr.f32.gmra.mrb[0].mxu0 %v1424
    %v1492 = vpop.f32.mrb[0].mxu0
    %v1493 = vadd.f32 0.0, %v1492
    %v1494 = vpop.f32.mrb[0].mxu0
    %1495 = vdwg.mxu0
    %1498 = vrot.lane.b32.xlu0 %v1113, 8
    %v1499 = vpop.permute.xlu0 %1498
    %1500 = vrot.lane.b32.xlu0 %v1189, 8
    %v1501 = vpop.permute.xlu0 %1500
    %1506 = vrot.lane.b32.xlu0 %v1265, 16
    %v1507 = vpop.permute.xlu0 %1506
    %1508 = vrot.lane.b32.xlu0 %v1341, 16
    %v1509 = vpop.permute.xlu0 %1508
    %1514 = vrot.lane.b32.xlu0 %v1417, 24
    %v1515 = vpop.permute.xlu0 %1514
    %1516 = vrot.lane.b32.xlu0 %v1493, 24
    %v1517 = vpop.permute.xlu0 %1516
    %v1520 = vsel %vm173, %v961, %v1499
    %v1521 = vsel %vm173, %v1037, %v1501
    %vm1522 = vcmask 130048
    %v1523 = vsel %vm1522, %v1520, %v1507
    %v1524 = vsel %vm1522, %v1521, %v1509
    %vm1525 = vcmask 195584
    %v1526 = vsel %vm1525, %v1523, %v1515
    %v1527 = vsel %vm1525, %v1524, %v1517
    %v1528 = vlaneseq
    %v1529 = vshrl.u32 %v1528, 7
    %v1530 = vsub.s32 0, %v1529
    %v1531 = vrot.slane %v68, %v1530
    %v1533 = vsel %vm75, %v1526, 0
    %v1536 = vsel %vm75, %v1527, 0
    %1538 = vmatprep.subr.mxu0 0.0
    %1539 = vmatpush1.msra.mxu0 %v55
    %1540 = vmatprep.subr.mxu0 0.0
    %1541 = vmatpush1.msra.mxu0 %v56
    %1542 = vmatprep.subr.mxu0 0.0
    %1543 = vmatpush1.msra.mxu0 %v57
    %1544 = vmatprep.subr.mxu0 0.0
    %1545 = vmatpush1.msra.mxu0 %v58
    %1546 = vmatprep.subr.mxu0 0.0
    %1547 = vmatpush1.msra.mxu0 0.0
    %1548 = vmatprep.subr.mxu0 0.0
    %1549 = vmatpush1.msra.mxu0 0.0
    %1550 = vmatprep.subr.mxu0 0.0
    %1551 = vmatpush1.msra.mxu0 0.0
    %1552 = vmatprep.subr.mxu0 0.0
    %1553 = vmatpush1.msra.mxu0 0.0
    %1554 = vmatprep.subr.mxu0 0.0
    %1555 = vmatpush1.msra.mxu0 0.0
    %1556 = vmatprep.subr.mxu0 0.0
    %1557 = vmatpush1.msra.mxu0 0.0
    %1558 = vmatprep.subr.mxu0 0.0
    %1559 = vmatpush1.msra.mxu0 0.0
    %1560 = vmatprep.subr.mxu0 0.0
    %1561 = vmatpush1.msra.mxu0 0.0
    %1562 = vmatprep.subr.mxu0 0.0
    %1563 = vmatpush1.msra.mxu0 0.0
    %1564 = vmatprep.subr.mxu0 0.0
    %1565 = vmatpush1.msra.mxu0 0.0
    %1566 = vmatprep.subr.mxu0 0.0
    %1567 = vmatpush1.msra.mxu0 0.0
    %1568 = vmatprep.subr.mxu0 0.0
    %1569 = vmatpush1.msra.mxu0 0.0
    %1570 = vmatprep.subr.mxu0 0.0
    %1571 = vmatpush1.msra.mxu0 0.0
    %1572 = vmatprep.subr.mxu0 0.0
    %1573 = vmatpush1.msra.mxu0 0.0
    %1574 = vmatprep.subr.mxu0 0.0
    %1575 = vmatpush1.msra.mxu0 0.0
    %1576 = vmatprep.subr.mxu0 0.0
    %1577 = vmatpush1.msra.mxu0 0.0
    %1578 = vmatprep.subr.mxu0 0.0
    %1579 = vmatpush1.msra.mxu0 0.0
    %1580 = vmatprep.subr.mxu0 0.0
    %1581 = vmatpush1.msra.mxu0 0.0
    %1582 = vmatprep.subr.mxu0 0.0
    %1583 = vmatpush1.msra.mxu0 0.0
    %1584 = vmatprep.subr.mxu0 0.0
    %1585 = vmatpush1.msra.mxu0 0.0
    %1586 = vmatprep.subr.mxu0 0.0
    %1587 = vmatpush1.msra.mxu0 0.0
    %1588 = vmatprep.subr.mxu0 0.0
    %1589 = vmatpush1.msra.mxu0 0.0
    %1590 = vmatprep.subr.mxu0 0.0
    %1591 = vmatpush1.msra.mxu0 0.0
    %1592 = vmatprep.subr.mxu0 0.0
    %1593 = vmatpush1.msra.mxu0 0.0
    %1594 = vmatprep.subr.mxu0 0.0
    %1595 = vmatpush1.msra.mxu0 0.0
    %1596 = vmatprep.subr.mxu0 0.0
    %1597 = vmatpush1.msra.mxu0 0.0
    %1598 = vmatprep.subr.mxu0 0.0
    %1599 = vmatpush1.msra.mxu0 0.0
    %1600 = vmatprep.subr.mxu0 0.0
    %1601 = vmatpush1.msra.mxu0 0.0
    %1602 = vmatprep.mubr.f32.mxu0 0.0
    %1603 = vmatmul.mubr.f32.gmra.mrb[0].mxu0 %v1533
    %v1604 = vpop.f32.mrb[0].mxu0
    %v1605 = vadd.f32 %v1531, %v1604
    %v1606 = vpop.f32.mrb[0].mxu0
    %1607 = vmatprep.mubr.f32.mxu0 0.0
    %1608 = vmatmul.mubr.f32.gmra.mrb[0].mxu0 %v1536
    %v1609 = vpop.f32.mrb[0].mxu0
    %v1610 = vadd.f32 %v1531, %v1609
    %v1611 = vpop.f32.mrb[0].mxu0
    %1612 = vdwg.mxu0
    %v1613 = vadd.f32 %v43, %v1605
    %v1614 = vadd.f32 %v44, %v1610
    %v1615 = vsel %vm75, %v1613, 0.0
    %1616 = vadd.xlane.f32.xlu0 %v1615
    %v1617 = vpop.xlane.xlu0 %1616
    %v1618 = vsel %vm75, %v1614, 0.0
    %1619 = vadd.xlane.f32.xlu0 %v1618
    %v1620 = vpop.xlane.xlu0 %1619
    %v1621 = vrcp.pop 32.0
    %v1622 = vmul.f32 %v1617, %v1621
    %v1623 = vmul.f32 %v1620, %v1621
    %v1624 = vsub.f32 %v1613, %v1622
    %v1625 = vsub.f32 %v1614, %v1623
    %v1626 = vmul.f32 %v1624, %v1624
    %v1627 = vmul.f32 %v1625, %v1625
    %v1628 = vsel %vm75, %v1626, 0.0
    %1629 = vadd.xlane.f32.xlu0 %v1628
    %v1630 = vpop.xlane.xlu0 %1629
    %v1631 = vsel %vm75, %v1627, 0.0
    %1632 = vadd.xlane.f32.xlu0 %v1631
    %v1633 = vpop.xlane.xlu0 %1632
    %v1634 = vmul.f32 %v1630, %v1621
    %v1635 = vmul.f32 %v1633, %v1621
    %v1636 = vadd.f32 %v1634, 1e-05
    %v1637 = vadd.f32 %v1635, 1e-05
    %v1638 = vrsqrt.pop %v1636
    %v1639 = vrsqrt.pop %v1637
    %v1640 = vmul.f32 %v1624, %v1638
    %v1641 = vmul.f32 %v1625, %v1639
    %1643 = vrot.lane.b32.xlu0 %v1531, 96
    %v1644 = vpop.permute.xlu0 %1643
    %v1646 = vmul.f32 %v1640, %v1644
    %v1647 = vmul.f32 %v1641, %v1644
    %1648 = vrot.lane.b32.xlu0 %v1531, 64
    %v1649 = vpop.permute.xlu0 %1648
    %v1651 = vadd.f32 %v1646, %v1649
    %v1652 = vadd.f32 %v1647, %v1649
    %v1653 = vlaneseq
    %v1654 = vshrl.u32 %v1653, 7
    %v1655 = vsub.s32 0, %v1654
    %v1656 = vrot.slane %v69, %v1655
    %1661 = vrot.lane.b32.xlu0 %v55, 96
    %v1662 = vpop.permute.xlu0 %1661
    %1663 = vrot.lane.b32.xlu0 %v56, 96
    %v1664 = vpop.permute.xlu0 %1663
    %1665 = vrot.lane.b32.xlu0 %v57, 96
    %v1666 = vpop.permute.xlu0 %1665
    %1667 = vrot.lane.b32.xlu0 %v58, 96
    %v1668 = vpop.permute.xlu0 %1667
    %v1674 = vsel %vm75, %v1651, 0
    %v1677 = vsel %vm75, %v1652, 0
    %1679 = vmatprep.subr.mxu0 0.0
    %1680 = vmatpush1.msra.mxu0 %v1662
    %1681 = vmatprep.subr.mxu0 0.0
    %1682 = vmatpush1.msra.mxu0 %v1664
    %1683 = vmatprep.subr.mxu0 0.0
    %1684 = vmatpush1.msra.mxu0 %v1666
    %1685 = vmatprep.subr.mxu0 0.0
    %1686 = vmatpush1.msra.mxu0 %v1668
    %1687 = vmatprep.subr.mxu0 0.0
    %1688 = vmatpush1.msra.mxu0 0.0
    %1689 = vmatprep.subr.mxu0 0.0
    %1690 = vmatpush1.msra.mxu0 0.0
    %1691 = vmatprep.subr.mxu0 0.0
    %1692 = vmatpush1.msra.mxu0 0.0
    %1693 = vmatprep.subr.mxu0 0.0
    %1694 = vmatpush1.msra.mxu0 0.0
    %1695 = vmatprep.subr.mxu0 0.0
    %1696 = vmatpush1.msra.mxu0 0.0
    %1697 = vmatprep.subr.mxu0 0.0
    %1698 = vmatpush1.msra.mxu0 0.0
    %1699 = vmatprep.subr.mxu0 0.0
    %1700 = vmatpush1.msra.mxu0 0.0
    %1701 = vmatprep.subr.mxu0 0.0
    %1702 = vmatpush1.msra.mxu0 0.0
    %1703 = vmatprep.subr.mxu0 0.0
    %1704 = vmatpush1.msra.mxu0 0.0
    %1705 = vmatprep.subr.mxu0 0.0
    %1706 = vmatpush1.msra.mxu0 0.0
    %1707 = vmatprep.subr.mxu0 0.0
    %1708 = vmatpush1.msra.mxu0 0.0
    %1709 = vmatprep.subr.mxu0 0.0
    %1710 = vmatpush1.msra.mxu0 0.0
    %1711 = vmatprep.subr.mxu0 0.0
    %1712 = vmatpush1.msra.mxu0 0.0
    %1713 = vmatprep.subr.mxu0 0.0
    %1714 = vmatpush1.msra.mxu0 0.0
    %1715 = vmatprep.subr.mxu0 0.0
    %1716 = vmatpush1.msra.mxu0 0.0
    %1717 = vmatprep.subr.mxu0 0.0
    %1718 = vmatpush1.msra.mxu0 0.0
    %1719 = vmatprep.subr.mxu0 0.0
    %1720 = vmatpush1.msra.mxu0 0.0
    %1721 = vmatprep.subr.mxu0 0.0
    %1722 = vmatpush1.msra.mxu0 0.0
    %1723 = vmatprep.subr.mxu0 0.0
    %1724 = vmatpush1.msra.mxu0 0.0
    %1725 = vmatprep.subr.mxu0 0.0
    %1726 = vmatpush1.msra.mxu0 0.0
    %1727 = vmatprep.subr.mxu0 0.0
    %1728 = vmatpush1.msra.mxu0 0.0
    %1729 = vmatprep.subr.mxu0 0.0
    %1730 = vmatpush1.msra.mxu0 0.0
    %1731 = vmatprep.subr.mxu0 0.0
    %1732 = vmatpush1.msra.mxu0 0.0
    %1733 = vmatprep.subr.mxu0 0.0
    %1734 = vmatpush1.msra.mxu0 0.0
    %1735 = vmatprep.subr.mxu0 0.0
    %1736 = vmatpush1.msra.mxu0 0.0
    %1737 = vmatprep.subr.mxu0 0.0
    %1738 = vmatpush1.msra.mxu0 0.0
    %1739 = vmatprep.subr.mxu0 0.0
    %1740 = vmatpush1.msra.mxu0 0.0
    %1741 = vmatprep.subr.mxu0 0.0
    %1742 = vmatpush1.msra.mxu0 0.0
    %1743 = vmatprep.mubr.f32.mxu0 0.0
    %1744 = vmatmul.mubr.f32.gmra.mrb[0].mxu0 %v1674
    %v1745 = vpop.f32.mrb[0].mxu0
    %v1746 = vadd.f32 %v1656, %v1745
    %v1747 = vpop.f32.mrb[0].mxu0
    %1748 = vmatprep.mubr.f32.mxu0 0.0
    %1749 = vmatmul.mubr.f32.gmra.mrb[0].mxu0 %v1677
    %v1750 = vpop.f32.mrb[0].mxu0
    %v1751 = vadd.f32 %v1656, %v1750
    %v1752 = vpop.f32.mrb[0].mxu0
    %1753 = vdwg.mxu0
    %v1754 = vmax.f32 %v1746, 0.0
    %v1755 = vmax.f32 %v1751, 0.0
    %v1756 = vlaneseq
    %v1757 = vshrl.u32 %v1756, 7
    %v1758 = vsub.s32 0, %v1757
    %v1759 = vrot.slane %v70, %v1758
    %vm1760 = vcmask 523264
    %v1762 = vsel %vm1760, %v1754, 0
    %v1765 = vsel %vm1760, %v1755, 0
    %1767 = vmatprep.subr.mxu0 0.0
    %1768 = vmatpush1.msra.mxu0 %v59
    %1769 = vmatprep.subr.mxu0 0.0
    %1770 = vmatpush1.msra.mxu0 %v60
    %1771 = vmatprep.subr.mxu0 0.0
    %1772 = vmatpush1.msra.mxu0 %v61
    %1773 = vmatprep.subr.mxu0 0.0
    %1774 = vmatpush1.msra.mxu0 %v62
    %1775 = vmatprep.subr.mxu0 0.0
    %1776 = vmatpush1.msra.mxu0 %v63
    %1777 = vmatprep.subr.mxu0 0.0
    %1778 = vmatpush1.msra.mxu0 %v64
    %1779 = vmatprep.subr.mxu0 0.0
    %1780 = vmatpush1.msra.mxu0 %v65
    %1781 = vmatprep.subr.mxu0 0.0
    %1782 = vmatpush1.msra.mxu0 %v66
    %1783 = vmatprep.subr.mxu0 0.0
    %1784 = vmatpush1.msra.mxu0 0.0
    %1785 = vmatprep.subr.mxu0 0.0
    %1786 = vmatpush1.msra.mxu0 0.0
    %1787 = vmatprep.subr.mxu0 0.0
    %1788 = vmatpush1.msra.mxu0 0.0
    %1789 = vmatprep.subr.mxu0 0.0
    %1790 = vmatpush1.msra.mxu0 0.0
    %1791 = vmatprep.subr.mxu0 0.0
    %1792 = vmatpush1.msra.mxu0 0.0
    %1793 = vmatprep.subr.mxu0 0.0
    %1794 = vmatpush1.msra.mxu0 0.0
    %1795 = vmatprep.subr.mxu0 0.0
    %1796 = vmatpush1.msra.mxu0 0.0
    %1797 = vmatprep.subr.mxu0 0.0
    %1798 = vmatpush1.msra.mxu0 0.0
    %1799 = vmatprep.subr.mxu0 0.0
    %1800 = vmatpush1.msra.mxu0 0.0
    %1801 = vmatprep.subr.mxu0 0.0
    %1802 = vmatpush1.msra.mxu0 0.0
    %1803 = vmatprep.subr.mxu0 0.0
    %1804 = vmatpush1.msra.mxu0 0.0
    %1805 = vmatprep.subr.mxu0 0.0
    %1806 = vmatpush1.msra.mxu0 0.0
    %1807 = vmatprep.subr.mxu0 0.0
    %1808 = vmatpush1.msra.mxu0 0.0
    %1809 = vmatprep.subr.mxu0 0.0
    %1810 = vmatpush1.msra.mxu0 0.0
    %1811 = vmatprep.subr.mxu0 0.0
    %1812 = vmatpush1.msra.mxu0 0.0
    %1813 = vmatprep.subr.mxu0 0.0
    %1814 = vmatpush1.msra.mxu0 0.0
    %1815 = vmatprep.subr.mxu0 0.0
    %1816 = vmatpush1.msra.mxu0 0.0
    %1817 = vmatprep.subr.mxu0 0.0
    %1818 = vmatpush1.msra.mxu0 0.0
    %1819 = vmatprep.subr.mxu0 0.0
    %1820 = vmatpush1.msra.mxu0 0.0
    %1821 = vmatprep.subr.mxu0 0.0
    %1822 = vmatpush1.msra.mxu0 0.0
    %1823 = vmatprep.subr.mxu0 0.0
    %1824 = vmatpush1.msra.mxu0 0.0
    %1825 = vmatprep.subr.mxu0 0.0
    %1826 = vmatpush1.msra.mxu0 0.0
    %1827 = vmatprep.subr.mxu0 0.0
    %1828 = vmatpush1.msra.mxu0 0.0
    %1829 = vmatprep.subr.mxu0 0.0
    %1830 = vmatpush1.msra.mxu0 0.0
    %1831 = vmatprep.mubr.f32.mxu0 0.0
    %1832 = vmatmul.mubr.f32.gmra.mrb[0].mxu0 %v1762
    %v1833 = vpop.f32.mrb[0].mxu0
    %v1834 = vadd.f32 %v1759, %v1833
    %v1835 = vpop.f32.mrb[0].mxu0
    %1836 = vmatprep.mubr.f32.mxu0 0.0
    %1837 = vmatmul.mubr.f32.gmra.mrb[0].mxu0 %v1765
    %v1838 = vpop.f32.mrb[0].mxu0
    %v1839 = vadd.f32 %v1759, %v1838
    %v1840 = vpop.f32.mrb[0].mxu0
    %1841 = vdwg.mxu0
    %v1842 = vadd.f32 %v1651, %v1834
    %v1843 = vadd.f32 %v1652, %v1839
    %v1844 = vsel %vm75, %v1842, 0.0
    %1845 = vadd.xlane.f32.xlu0 %v1844
    %v1846 = vpop.xlane.xlu0 %1845
    %v1847 = vsel %vm75, %v1843, 0.0
    %1848 = vadd.xlane.f32.xlu0 %v1847
    %v1849 = vpop.xlane.xlu0 %1848
    %v1850 = vmul.f32 %v1846, %v1621
    %v1851 = vmul.f32 %v1849, %v1621
    %v1852 = vsub.f32 %v1842, %v1850
    %v1853 = vsub.f32 %v1843, %v1851
    %v1854 = vmul.f32 %v1852, %v1852
    %v1855 = vmul.f32 %v1853, %v1853
    %v1856 = vsel %vm75, %v1854, 0.0
    %1857 = vadd.xlane.f32.xlu0 %v1856
    %v1858 = vpop.xlane.xlu0 %1857
    %v1859 = vsel %vm75, %v1855, 0.0
    %1860 = vadd.xlane.f32.xlu0 %v1859
    %v1861 = vpop.xlane.xlu0 %1860
    %v1862 = vmul.f32 %v1858, %v1621
    %v1863 = vmul.f32 %v1861, %v1621
    %v1864 = vadd.f32 %v1862, 1e-05
    %v1865 = vadd.f32 %v1863, 1e-05
    %v1866 = vrsqrt.pop %v1864
    %v1867 = vrsqrt.pop %v1865
    %v1868 = vmul.f32 %v1852, %v1866
    %v1869 = vmul.f32 %v1853, %v1867
    %1871 = vrot.lane.b32.xlu0 %v1759, 96
    %v1872 = vpop.permute.xlu0 %1871
    %v1874 = vmul.f32 %v1868, %v1872
    %v1875 = vmul.f32 %v1869, %v1872
    %1876 = vrot.lane.b32.xlu0 %v1759, 64
    %v1877 = vpop.permute.xlu0 %1876
    %v1879 = vadd.f32 %v1874, %v1877
    %v1880 = vadd.f32 %v1875, %v1877
    %1881 = vst.msk [vmem:[#allocation7] sm:$0xff] %vm75, %v1879
    %1882 = vst.msk [vmem:[#allocation7 + $0x8] sm:$0xff] %vm75, %v1880
    // Predicated region
    $region22: #{tpu_custom_call.1} parent=1 // pred_check
      _
    $region23: #{tpu_custom_call.1} parent=1 // pred_check_branch
      %1884 = sbr.rel (0) target = $region25
    $region24: #{tpu_custom_call.1} parent=1 // pred_region
      %s1886 = ssub.s32 256, 256
      %1887 = vsyncadd [#allocation4], %s1886
      %s1888 = sshll.u32 [#allocation7], 4
      %s1889 = int_to_ptr.vmem [resolvable:$true] %s1888
      %1894 = dma.vmem_to_hbm [thread:$0]  %s1889, 256, %s3, [#allocation4], 128, 128, 8
    $region25: #{tpu_custom_call.1} parent=1 // pred_fallthru
      _
    // Predicated region
    $region26: #{tpu_custom_call.1} parent=1 // pred_check
      _
    $region27: #{tpu_custom_call.1} parent=1 // pred_check_branch
      %1896 = sbr.rel (0) target = $region29
    $region28: #{tpu_custom_call.1} parent=1 // pred_region
      %1897 = dma.done [#allocation4], 256
    $region29: #{tpu_custom_call.1} parent=1 // pred_fallthru
      _
    %1898 = vsyncpa [#allocation3], 1
    %1899 = vsyncpa [#allocation6], 1
    %1900 = vsyncpa [#allocation4], 1

</llo_original>
